<compile_context>
chip_gen: v6e
topology: v6e:2x2x1
jax: 0.10.0
libtpu: 0.0.40
codegen_flags: <defaults>
</compile_context>

<pallas_src>
import functools
import math

import jax
import jax.numpy as jnp
from jax.experimental import pallas as pl
from jax.experimental.pallas import tpu as pltpu

_LANES = 128
_HIGHEST = jax.lax.Precision.HIGHEST  # fp32 contraction on the MXU


def _vmem_capacity_bytes():
    """Per-core VMEM capacity; used only to size tiles and the scoped limit."""
    try:
        info = pltpu.get_tpu_info()
        for attr in ("vmem_capacity_bytes", "vmem_bytes", "vmem_size_bytes"):
            v = getattr(info, attr, None)
            if v:
                return int(v)
    except Exception:
        pass
    return 64 << 20  # conservative default (v7x per-TensorCore VMEM)


def _layernorm_kernel(x_ref, o_ref, *, eps, hidden):
    """Base path: (tile, hidden) block, one-pass stats per row over `hidden`."""
    x = x_ref[...]
    if x.dtype != jnp.float32:
        x = x.astype(jnp.float32)
    s = jnp.sum(x, axis=-1, keepdims=True)            # (T, 1)
    ss = jnp.sum(x * x, axis=-1, keepdims=True)       # (T, 1)
    mean = s * (1.0 / hidden)
    nm1 = max(hidden - 1, 1)                          # guard hidden == 1
    var = jnp.maximum((ss - s * mean) * (1.0 / nm1), 0.0)
    # Exact reciprocal: stats column is (T,1); approx=True (EUP) buys ~nothing.
    inv = pl.reciprocal(jnp.sqrt(var) + eps, approx=False)
    o_ref[...] = ((x - mean) * inv).astype(o_ref.dtype)


def _layernorm_kernel_packed(x_ref, a_ref, at_ref, o_ref, *, eps, hidden):
    """Lane-dense path for hidden < 128: each block row packs `groups` logical
    rows (width = groups*hidden, a multiple of 128).  Segmented sums and the
    broadcast-back of per-segment stats run on the idle MXU via the constant
    block-diagonal 0/1 matrices a (W,G) / at (G,W)."""
    x = x_ref[...]
    if x.dtype != jnp.float32:
        x = x.astype(jnp.float32)
    a = a_ref[...]                                     # (W, G)
    at = at_ref[...]                                   # (G, W)
    s = jnp.dot(x, a, preferred_element_type=jnp.float32,
                precision=_HIGHEST)                    # (T, G) per-segment sums
    ss = jnp.dot(x * x, a, preferred_element_type=jnp.float32,
                 precision=_HIGHEST)                   # (T, G)
    mean = s * (1.0 / hidden)
    nm1 = max(hidden - 1, 1)
    var = jnp.maximum((ss - s * mean) * (1.0 / nm1), 0.0)
    inv = pl.reciprocal(jnp.sqrt(var) + eps, approx=False)      # (T, G)
    mean_full = jnp.dot(mean, at, preferred_element_type=jnp.float32,
                        precision=_HIGHEST)            # (T, W) broadcast-back
    inv_full = jnp.dot(inv, at, preferred_element_type=jnp.float32,
                       precision=_HIGHEST)             # (T, W)
    o_ref[...] = ((x - mean_full) * inv_full).astype(o_ref.dtype)


def _pick_tile_rows(n_rows, row_bytes, sublane_gran, target_block_bytes):
    """Byte-budgeted row tile (~target_block_bytes), sublane-aligned, and on
    large inputs >= 4 grid steps so both v7x TensorCores get >= 2 steps each
    and DMA double-buffering overlaps compute."""
    if n_rows <= sublane_gran:
        return int(n_rows)                             # single block, full dim
    t = max(sublane_gran,
            (target_block_bytes // row_bytes) // sublane_gran * sublane_gran)
    quarter = (n_rows // 4) // sublane_gran * sublane_gran
    if quarter >= sublane_gran:
        t = min(t, quarter)
    return int(min(t, n_rows))


def layer_norm(x, eps=1e-6):
    orig_shape = x.shape
    hidden = orig_shape[-1]
    rows = math.prod(orig_shape[:-1]) if len(orig_shape) > 1 else 1
    x2 = x.reshape(rows, hidden)
    itemsize = jnp.dtype(x.dtype).itemsize
    sublane_gran = {4: 8, 2: 16, 1: 32}.get(itemsize, 8)

    vmem_cap = _vmem_capacity_bytes()
    # ~8 MiB blocks on 128 MiB-VMEM parts (v5e/v6e), ~4 MiB on v7x (64 MiB):
    # big DMAs amortize the ~0.35 us/step grid overhead of this HBM-bound kernel.
    target_block_bytes = (8 << 20) if vmem_cap >= (96 << 20) else (4 << 20)

    # Lane-dense packing: fold g = 128/gcd(H,128) logical rows into one
    # (g*H)-lane block row so every load/store uses full 128-lane vregs.
    groups = _LANES // math.gcd(hidden, _LANES) if hidden < _LANES else 1
    use_packed = hidden < _LANES and 2 <= groups <= 32
    extra_args = ()
    extra_specs = []
    pad_rows = 0
    if use_packed:
        pad_rows = (-rows) % groups
        if pad_rows:                       # rare; costs one extra input copy
            x2 = jnp.pad(x2, ((0, pad_rows), (0, 0)))
        n_rows = (rows + pad_rows) // groups
        width = groups * hidden                        # multiple of 128
        x2 = x2.reshape(n_rows, width)                 # contiguous -> free
        seg = jnp.arange(width, dtype=jnp.int32) // hidden
        a = (seg[:, None] == jnp.arange(groups, dtype=jnp.int32)[None, :]
             ).astype(jnp.float32)                     # (W, G) block-diag ones
        a_t = a.T                                      # (G, W)
        kernel = functools.partial(_layernorm_kernel_packed,
                                   eps=eps, hidden=hidden)
        extra_args = (a, a_t)
        # Constant block index -> fetched once, stays resident across the grid.
        extra_specs = [pl.BlockSpec((width, groups), lambda i: (0, 0)),
                       pl.BlockSpec((groups, width), lambda i: (0, 0))]
    else:
        # TODO(synk): H < 128 with gcd(H,128) < 4 (e.g. odd H) still uses the
        # masked (non lane-dense) store fallback; correct but slower.
        n_rows, width = rows, hidden
        kernel = functools.partial(_layernorm_kernel, eps=eps, hidden=hidden)

    row_bytes = width * itemsize
    tile = _pick_tile_rows(n_rows, row_bytes, sublane_gran, target_block_bytes)
    grid = (pl.cdiv(n_rows, tile),)

    # VMEM budget: double-buffered in+out blocks plus ~3 f32 copies of the block
    # for the in-kernel upcast/temps, plus headroom; capped ~16 MiB below the
    # physical per-core VMEM (=> ~48 MiB on v7x, ~112 MiB on v5e/v6e).
    block_bytes = tile * row_bytes
    f32_block_bytes = tile * width * 4
    vmem_cap_limit = max(32 << 20, vmem_cap - (16 << 20))
    vmem_limit = int(min(4 * block_bytes + 3 * f32_block_bytes + (4 << 20),
                         vmem_cap_limit))
    vmem_limit = max(vmem_limit, 16 << 20)

    out = pl.pallas_call(
        kernel,
        out_shape=jax.ShapeDtypeStruct((n_rows, width), x.dtype),
        grid_spec=pltpu.PrefetchScalarGridSpec(
            num_scalar_prefetch=0,
            grid=grid,
            in_specs=[pl.BlockSpec((tile, width), lambda i: (i, 0))] + extra_specs,
            out_specs=pl.BlockSpec((tile, width), lambda i: (i, 0)),
        ),
        compiler_params=pltpu.CompilerParams(
            dimension_semantics=("parallel",),
            vmem_limit_bytes=vmem_limit,
        ),
    )(x2, *extra_args)

    if use_packed:
        out = out.reshape(rows + pad_rows, hidden)
        if pad_rows:
            out = out[:rows]
    return out.reshape(orig_shape)


def _reference(x, eps=1e-6):
    # Pure-JAX reference matching the PyTorch module (unbiased std, eps outside).
    xf = x.astype(jnp.float32)
    mean = jnp.mean(xf, axis=-1, keepdims=True)
    var = jnp.sum((xf - mean) ** 2, axis=-1, keepdims=True) / max(x.shape[-1] - 1, 1)
    std = jnp.sqrt(var)
    return (xf - mean) / (std + eps)


if __name__ == "__main__":
    key = jax.random.PRNGKey(0)
    B, S, H = 2, 8, 32
    x = jax.random.normal(key, (B, S, H), dtype=jnp.float32)

    # lane-packed MXU path (H=32 < 128, rows divisible by groups)
    y = jax.block_until_ready(layer_norm(x, eps=1e-6))
    assert jnp.allclose(y, _reference(x, eps=1e-6), atol=1e-4, rtol=1e-4), \
        "mismatch (packed f32)"

    # lane-packed path with wrapper-side row padding (rows % groups != 0)
    x_pad = jax.random.normal(jax.random.PRNGKey(2), (3, 7, 32), dtype=jnp.float32)
    y_pad = jax.block_until_ready(layer_norm(x_pad, eps=1e-6))
    assert jnp.allclose(y_pad, _reference(x_pad, eps=1e-6), atol=1e-4, rtol=1e-4), \
        "mismatch (packed f32, padded rows)"

    # base path (H >= 128)
    x_big = jax.random.normal(jax.random.PRNGKey(1), (4, 6, 256), dtype=jnp.float32)
    y_big = jax.block_until_ready(layer_norm(x_big, eps=1e-6))
    assert jnp.allclose(y_big, _reference(x_big, eps=1e-6), atol=1e-4, rtol=1e-4), \
        "mismatch (base f32)"

    # bf16 end-to-end (f32 math in the kernel, bf16 I/O)
    x_bf = x.astype(jnp.bfloat16)
    y_bf = jax.block_until_ready(layer_norm(x_bf, eps=1e-6))
    assert jnp.allclose(y_bf.astype(jnp.float32), _reference(x_bf, eps=1e-6),
                        atol=0.1, rtol=0.05), "mismatch (bf16)"

    print("KERNEL_OK")
</pallas_src>

<mosaic_0001>
module attributes {stable_mosaic.version = 11 : i64} {
  func.func @_layernorm_kernel_packed(%arg0: i32, %arg1: memref<4x128xf32, #tpu.memory_space<vmem>>, %arg2: memref<128x4xf32, #tpu.memory_space<vmem>>, %arg3: memref<4x128xf32, #tpu.memory_space<vmem>>, %arg4: memref<4x128xf32, #tpu.memory_space<vmem>>) attributes {dimension_semantics = [#tpu.dimension_semantics<parallel>], iteration_bounds = array<i64: 1>, scalar_prefetch = 0 : i64, scratch_operands = 0 : i64, tpu.core_type = #tpu.core_type<tc>, window_params = [{transform_indices = @transform_0, window_bounds = array<i64: 4, 128>}, {pipeline_mode = #tpu.pipeline_mode<synchronous>, transform_indices = @transform_1, window_bounds = array<i64: 128, 4>}, {pipeline_mode = #tpu.pipeline_mode<synchronous>, transform_indices = @transform_2, window_bounds = array<i64: 4, 128>}, {transform_indices = @transform_3, window_bounds = array<i64: 4, 128>}]} {
    %c0 = arith.constant 0 : index
    %c0_0 = arith.constant 0 : index
    %0 = vector.load %arg1[%c0, %c0_0] : memref<4x128xf32, #tpu.memory_space<vmem>>, vector<4x128xf32>
    %c0_1 = arith.constant 0 : index
    %c0_2 = arith.constant 0 : index
    %1 = vector.load %arg2[%c0_1, %c0_2] : memref<128x4xf32, #tpu.memory_space<vmem>>, vector<128x4xf32>
    %c0_3 = arith.constant 0 : index
    %c0_4 = arith.constant 0 : index
    %2 = vector.load %arg3[%c0_3, %c0_4] : memref<4x128xf32, #tpu.memory_space<vmem>>, vector<4x128xf32>
    %cst = arith.constant dense<0.000000e+00> : vector<4x4xf32>
    %3 = tpu.matmul %0, %1, %cst {dimension_numbers = #tpu.dot_dimension_numbers<[1], [0], [0], [1], [0, 0, 1, 1], [], []>, precision = #tpu.contract_precision<fp32>} : vector<4x128xf32>, vector<128x4xf32>, vector<4x4xf32> -> vector<4x4xf32>
    %4 = arith.mulf %0, %0 : vector<4x128xf32>
    %cst_5 = arith.constant dense<0.000000e+00> : vector<4x4xf32>
    %5 = tpu.matmul %4, %1, %cst_5 {dimension_numbers = #tpu.dot_dimension_numbers<[1], [0], [0], [1], [0, 0, 1, 1], [], []>, precision = #tpu.contract_precision<fp32>} : vector<4x128xf32>, vector<128x4xf32>, vector<4x4xf32> -> vector<4x4xf32>
    %cst_6 = arith.constant 3.125000e-02 : f32
    %6 = vector.broadcast %cst_6 : f32 to vector<4x4xf32>
    %7 = arith.mulf %3, %6 : vector<4x4xf32>
    %8 = arith.mulf %3, %7 : vector<4x4xf32>
    %9 = arith.subf %5, %8 : vector<4x4xf32>
    %cst_7 = arith.constant 0.0322580636 : f32
    %10 = vector.broadcast %cst_7 : f32 to vector<4x4xf32>
    %11 = arith.mulf %9, %10 : vector<4x4xf32>
    %cst_8 = arith.constant 0.000000e+00 : f32
    %12 = vector.broadcast %cst_8 : f32 to vector<4x4xf32>
    %13 = arith.maximumf %11, %12 : vector<4x4xf32>
    %14 = math.sqrt %13 : vector<4x4xf32>
    %cst_9 = arith.constant 9.99999997E-7 : f32
    %15 = vector.broadcast %cst_9 : f32 to vector<4x4xf32>
    %16 = arith.addf %14, %15 : vector<4x4xf32>
    %17 = tpu.reciprocal %16 : vector<4x4xf32> -> vector<4x4xf32>
    %cst_10 = arith.constant dense<0.000000e+00> : vector<4x128xf32>
    %18 = tpu.matmul %7, %2, %cst_10 {dimension_numbers = #tpu.dot_dimension_numbers<[1], [0], [0], [1], [0, 0, 1, 1], [], []>, precision = #tpu.contract_precision<fp32>} : vector<4x4xf32>, vector<4x128xf32>, vector<4x128xf32> -> vector<4x128xf32>
    %cst_11 = arith.constant dense<0.000000e+00> : vector<4x128xf32>
    %19 = tpu.matmul %17, %2, %cst_11 {dimension_numbers = #tpu.dot_dimension_numbers<[1], [0], [0], [1], [0, 0, 1, 1], [], []>, precision = #tpu.contract_precision<fp32>} : vector<4x4xf32>, vector<4x128xf32>, vector<4x128xf32> -> vector<4x128xf32>
    %20 = arith.subf %0, %18 : vector<4x128xf32>
    %21 = arith.mulf %20, %19 : vector<4x128xf32>
    %c0_12 = arith.constant 0 : index
    %c0_13 = arith.constant 0 : index
    %22 = vector.load %arg4[%c0_12, %c0_13] : memref<4x128xf32, #tpu.memory_space<vmem>>, vector<4x128xf32>
    tpu.vector_store %arg4[%c0_12, %c0_13], %21 {strides = array<i32>} : memref<4x128xf32, #tpu.memory_space<vmem>>, vector<4x128xf32>,
    return
  }
  func.func @transform_0(%arg0: i32) -> (i32, i32) {
    %c0_i32 = arith.constant 0 : i32
    %c0_i32_0 = arith.constant 0 : i32
    return %arg0, %c0_i32 : i32, i32
  }
  func.func @transform_1(%arg0: i32) -> (i32, i32) {
    %c0_i32 = arith.constant 0 : i32
    %c0_i32_0 = arith.constant 0 : i32
    %c0_i32_1 = arith.constant 0 : i32
    return %c0_i32, %c0_i32_0 : i32, i32
  }
  func.func @transform_2(%arg0: i32) -> (i32, i32) {
    %c0_i32 = arith.constant 0 : i32
    %c0_i32_0 = arith.constant 0 : i32
    %c0_i32_1 = arith.constant 0 : i32
    return %c0_i32, %c0_i32_0 : i32, i32
  }
  func.func @transform_3(%arg0: i32) -> (i32, i32) {
    %c0_i32 = arith.constant 0 : i32
    %c0_i32_0 = arith.constant 0 : i32
    return %arg0, %c0_i32 : i32, i32
  }
}

</mosaic_0001>

<llo_original>
// kernel: tpu_custom_call.1
$region0: #{tpu_custom_call.1}
  #allocation0 [shape = 'u32[]', space=smem, size = 0x4, offset = 0x4, fixed_abs, tag = 'smem constant byte address 0x4 - core index']
  #allocation1 [shape = 'u32[144,128]{1,0:T(1,128)}', space=vmem, size = 0x12000, scoped, tag = 'internal scratch']
  %s0 = inlined_call_operand.vmem [shape: f32[4,128], index: 0, kind: input, shape index: {}]
  %s1 = inlined_call_operand.vmem [shape: f32[128,4], index: 1, kind: input, shape index: {}]
  %s2 = inlined_call_operand.vmem [shape: f32[4,128], index: 2, kind: input, shape index: {}]
  %s3 = inlined_call_operand.hbm [shape: f32[4,128], index: 3, kind: output, shape index: {}]
  %s4 = sld [smem:[#allocation0]]
  $region22: #{tpu_custom_call.1} parent=0
    _
  %s6 = ssub.s32 1, %s4
  %s7 = scalar_select 0, %s6, %s4
  $region1: #{tpu_custom_call.1} parent=0
    #allocation2 [shape = 'u8[2048]{0}', space=vmem, size = 0x800, scoped, tag = 'output window, operand 0, single buffered']
    #allocation3 [shape = 's32[1]{0}', space=sflag, size = 0x4, scoped, tag = 'scoped memory for tpu_custom_call.1']
    %8 = vsyncpa [#allocation3], 0
    // Predicated region
    $region2: #{tpu_custom_call.1} parent=1 // pred_check
      _
    $region3: #{tpu_custom_call.1} parent=1 // pred_check_branch
      %10 = sbr.rel (0) target = $region5
    $region4: #{tpu_custom_call.1} parent=1 // pred_region
      _
    $region5: #{tpu_custom_call.1} parent=1 // pred_fallthru
      _
    // Predicated region
    $region6: #{tpu_custom_call.1} parent=1 // pred_check
      _
    $region7: #{tpu_custom_call.1} parent=1 // pred_check_branch
      %12 = sbr.rel (0) target = $region9
    $region8: #{tpu_custom_call.1} parent=1 // pred_region
      _
    $region9: #{tpu_custom_call.1} parent=1 // pred_fallthru
      _
    // Predicated region
    $region10: #{tpu_custom_call.1} parent=1 // pred_check
      _
    $region11: #{tpu_custom_call.1} parent=1 // pred_check_branch
      %14 = sbr.rel (0) target = $region13
    $region12: #{tpu_custom_call.1} parent=1 // pred_region
      _
    $region13: #{tpu_custom_call.1} parent=1 // pred_fallthru
      _
    %v15 = vld [vmem:[%s0] sm:$0xf]
    %v16 = vld [vmem:[%s1] sm:$0xff]
    %v17 = vld [vmem:[%s1 + $0x8] sm:$0xff]
    %v18 = vld [vmem:[%s1 + $0x10] sm:$0xff]
    %v19 = vld [vmem:[%s1 + $0x18] sm:$0xff]
    %v20 = vld [vmem:[%s1 + $0x20] sm:$0xff]
    %v21 = vld [vmem:[%s1 + $0x28] sm:$0xff]
    %v22 = vld [vmem:[%s1 + $0x30] sm:$0xff]
    %v23 = vld [vmem:[%s1 + $0x38] sm:$0xff]
    %v24 = vld [vmem:[%s1 + $0x40] sm:$0xff]
    %v25 = vld [vmem:[%s1 + $0x48] sm:$0xff]
    %v26 = vld [vmem:[%s1 + $0x50] sm:$0xff]
    %v27 = vld [vmem:[%s1 + $0x58] sm:$0xff]
    %v28 = vld [vmem:[%s1 + $0x60] sm:$0xff]
    %v29 = vld [vmem:[%s1 + $0x68] sm:$0xff]
    %v30 = vld [vmem:[%s1 + $0x70] sm:$0xff]
    %v31 = vld [vmem:[%s1 + $0x78] sm:$0xff]
    %v32 = vld [vmem:[%s2] sm:$0xf]
    %33 = vmatprep.subr.mxu0 0.0
    %v34 = vand.u32 %v31, 4294901760
    %35 = vmatpush1.msra.mxu0 %v34
    %36 = vmatprep.subr.mxu0 0.0
    %v37 = vand.u32 %v30, 4294901760
    %38 = vmatpush1.msra.mxu0 %v37
    %39 = vmatprep.subr.mxu0 0.0
    %v40 = vand.u32 %v29, 4294901760
    %41 = vmatpush1.msra.mxu0 %v40
    %42 = vmatprep.subr.mxu0 0.0
    %v43 = vand.u32 %v28, 4294901760
    %44 = vmatpush1.msra.mxu0 %v43
    %45 = vmatprep.subr.mxu0 0.0
    %v46 = vand.u32 %v27, 4294901760
    %47 = vmatpush1.msra.mxu0 %v46
    %48 = vmatprep.subr.mxu0 0.0
    %v49 = vand.u32 %v26, 4294901760
    %50 = vmatpush1.msra.mxu0 %v49
    %51 = vmatprep.subr.mxu0 0.0
    %v52 = vand.u32 %v25, 4294901760
    %53 = vmatpush1.msra.mxu0 %v52
    %54 = vmatprep.subr.mxu0 0.0
    %v55 = vand.u32 %v24, 4294901760
    %56 = vmatpush1.msra.mxu0 %v55
    %57 = vmatprep.subr.mxu0 0.0
    %v58 = vand.u32 %v23, 4294901760
    %59 = vmatpush1.msra.mxu0 %v58
    %60 = vmatprep.subr.mxu0 0.0
    %v61 = vand.u32 %v22, 4294901760
    %62 = vmatpush1.msra.mxu0 %v61
    %63 = vmatprep.subr.mxu0 0.0
    %v64 = vand.u32 %v21, 4294901760
    %65 = vmatpush1.msra.mxu0 %v64
    %66 = vmatprep.subr.mxu0 0.0
    %v67 = vand.u32 %v20, 4294901760
    %68 = vmatpush1.msra.mxu0 %v67
    %69 = vmatprep.subr.mxu0 0.0
    %v70 = vand.u32 %v19, 4294901760
    %71 = vmatpush1.msra.mxu0 %v70
    %72 = vmatprep.subr.mxu0 0.0
    %v73 = vand.u32 %v18, 4294901760
    %74 = vmatpush1.msra.mxu0 %v73
    %75 = vmatprep.subr.mxu0 0.0
    %v76 = vand.u32 %v17, 4294901760
    %77 = vmatpush1.msra.mxu0 %v76
    %78 = vmatprep.subr.mxu0 0.0
    %v79 = vand.u32 %v16, 4294901760
    %80 = vmatpush1.msra.mxu0 %v79
    %81 = vmatprep.subr.mxu0 0.0
    %82 = vmatpush2.msra.mxu0 0.0
    %83 = vmatprep.subr.mxu0 0.0
    %84 = vmatpush2.msra.mxu0 0.0
    %85 = vmatprep.subr.mxu0 0.0
    %86 = vmatpush2.msra.mxu0 0.0
    %87 = vmatprep.subr.mxu0 0.0
    %88 = vmatpush2.msra.mxu0 0.0
    %89 = vmatprep.subr.mxu0 0.0
    %90 = vmatpush2.msra.mxu0 0.0
    %91 = vmatprep.subr.mxu0 0.0
    %92 = vmatpush2.msra.mxu0 0.0
    %93 = vmatprep.subr.mxu0 0.0
    %94 = vmatpush2.msra.mxu0 0.0
    %95 = vmatprep.subr.mxu0 0.0
    %96 = vmatpush2.msra.mxu0 0.0
    %97 = vmatprep.subr.mxu0 0.0
    %98 = vmatpush2.msra.mxu0 0.0
    %99 = vmatprep.subr.mxu0 0.0
    %100 = vmatpush2.msra.mxu0 0.0
    %101 = vmatprep.subr.mxu0 0.0
    %102 = vmatpush2.msra.mxu0 0.0
    %103 = vmatprep.subr.mxu0 0.0
    %104 = vmatpush2.msra.mxu0 0.0
    %105 = vmatprep.subr.mxu0 0.0
    %106 = vmatpush2.msra.mxu0 0.0
    %107 = vmatprep.subr.mxu0 0.0
    %108 = vmatpush2.msra.mxu0 0.0
    %109 = vmatprep.subr.mxu0 0.0
    %110 = vmatpush2.msra.mxu0 0.0
    %111 = vmatprep.subr.mxu0 0.0
    %112 = vmatpush2.msra.mxu0 0.0
    %113 = vmatprep.mubr.f32.mxu0 0.0
    %v114 = vand.u32 %v15, 4294901760
    %v115 = vsub.f32 %v15, %v114
    %v116 = vand.u32 %v115, 4294901760
    %v117 = vsub.f32 %v115, %v116
    %v118 = vand.u32 %v117, 4294901760
    %119 = vmatmul.mubr.f32.gmra.mxu0 %v118
    %v120 = vpop.f32.mrf.mxu0
    %v121 = vadd.f32 0.0, %v120
    %v122 = vpop.f32.mrf.mxu0
    %123 = vdwg.mxu0
    %124 = vmatprep.subr.mxu0 0.0
    %v125 = vand.u32 %v31, 4294901760
    %v126 = vsub.f32 %v31, %v125
    %v127 = vand.u32 %v126, 4294901760
    %v128 = vsub.f32 %v126, %v127
    %v129 = vand.u32 %v128, 4294901760
    %130 = vmatpush1.msra.mxu0 %v129
    %131 = vmatprep.subr.mxu0 0.0
    %v132 = vand.u32 %v30, 4294901760
    %v133 = vsub.f32 %v30, %v132
    %v134 = vand.u32 %v133, 4294901760
    %v135 = vsub.f32 %v133, %v134
    %v136 = vand.u32 %v135, 4294901760
    %137 = vmatpush1.msra.mxu0 %v136
    %138 = vmatprep.subr.mxu0 0.0
    %v139 = vand.u32 %v29, 4294901760
    %v140 = vsub.f32 %v29, %v139
    %v141 = vand.u32 %v140, 4294901760
    %v142 = vsub.f32 %v140, %v141
    %v143 = vand.u32 %v142, 4294901760
    %144 = vmatpush1.msra.mxu0 %v143
    %145 = vmatprep.subr.mxu0 0.0
    %v146 = vand.u32 %v28, 4294901760
    %v147 = vsub.f32 %v28, %v146
    %v148 = vand.u32 %v147, 4294901760
    %v149 = vsub.f32 %v147, %v148
    %v150 = vand.u32 %v149, 4294901760
    %151 = vmatpush1.msra.mxu0 %v150
    %152 = vmatprep.subr.mxu0 0.0
    %v153 = vand.u32 %v27, 4294901760
    %v154 = vsub.f32 %v27, %v153
    %v155 = vand.u32 %v154, 4294901760
    %v156 = vsub.f32 %v154, %v155
    %v157 = vand.u32 %v156, 4294901760
    %158 = vmatpush1.msra.mxu0 %v157
    %159 = vmatprep.subr.mxu0 0.0
    %v160 = vand.u32 %v26, 4294901760
    %v161 = vsub.f32 %v26, %v160
    %v162 = vand.u32 %v161, 4294901760
    %v163 = vsub.f32 %v161, %v162
    %v164 = vand.u32 %v163, 4294901760
    %165 = vmatpush1.msra.mxu0 %v164
    %166 = vmatprep.subr.mxu0 0.0
    %v167 = vand.u32 %v25, 4294901760
    %v168 = vsub.f32 %v25, %v167
    %v169 = vand.u32 %v168, 4294901760
    %v170 = vsub.f32 %v168, %v169
    %v171 = vand.u32 %v170, 4294901760
    %172 = vmatpush1.msra.mxu0 %v171
    %173 = vmatprep.subr.mxu0 0.0
    %v174 = vand.u32 %v24, 4294901760
    %v175 = vsub.f32 %v24, %v174
    %v176 = vand.u32 %v175, 4294901760
    %v177 = vsub.f32 %v175, %v176
    %v178 = vand.u32 %v177, 4294901760
    %179 = vmatpush1.msra.mxu0 %v178
    %180 = vmatprep.subr.mxu0 0.0
    %v181 = vand.u32 %v23, 4294901760
    %v182 = vsub.f32 %v23, %v181
    %v183 = vand.u32 %v182, 4294901760
    %v184 = vsub.f32 %v182, %v183
    %v185 = vand.u32 %v184, 4294901760
    %186 = vmatpush1.msra.mxu0 %v185
    %187 = vmatprep.subr.mxu0 0.0
    %v188 = vand.u32 %v22, 4294901760
    %v189 = vsub.f32 %v22, %v188
    %v190 = vand.u32 %v189, 4294901760
    %v191 = vsub.f32 %v189, %v190
    %v192 = vand.u32 %v191, 4294901760
    %193 = vmatpush1.msra.mxu0 %v192
    %194 = vmatprep.subr.mxu0 0.0
    %v195 = vand.u32 %v21, 4294901760
    %v196 = vsub.f32 %v21, %v195
    %v197 = vand.u32 %v196, 4294901760
    %v198 = vsub.f32 %v196, %v197
    %v199 = vand.u32 %v198, 4294901760
    %200 = vmatpush1.msra.mxu0 %v199
    %201 = vmatprep.subr.mxu0 0.0
    %v202 = vand.u32 %v20, 4294901760
    %v203 = vsub.f32 %v20, %v202
    %v204 = vand.u32 %v203, 4294901760
    %v205 = vsub.f32 %v203, %v204
    %v206 = vand.u32 %v205, 4294901760
    %207 = vmatpush1.msra.mxu0 %v206
    %208 = vmatprep.subr.mxu0 0.0
    %v209 = vand.u32 %v19, 4294901760
    %v210 = vsub.f32 %v19, %v209
    %v211 = vand.u32 %v210, 4294901760
    %v212 = vsub.f32 %v210, %v211
    %v213 = vand.u32 %v212, 4294901760
    %214 = vmatpush1.msra.mxu0 %v213
    %215 = vmatprep.subr.mxu0 0.0
    %v216 = vand.u32 %v18, 4294901760
    %v217 = vsub.f32 %v18, %v216
    %v218 = vand.u32 %v217, 4294901760
    %v219 = vsub.f32 %v217, %v218
    %v220 = vand.u32 %v219, 4294901760
    %221 = vmatpush1.msra.mxu0 %v220
    %222 = vmatprep.subr.mxu0 0.0
    %v223 = vand.u32 %v17, 4294901760
    %v224 = vsub.f32 %v17, %v223
    %v225 = vand.u32 %v224, 4294901760
    %v226 = vsub.f32 %v224, %v225
    %v227 = vand.u32 %v226, 4294901760
    %228 = vmatpush1.msra.mxu0 %v227
    %229 = vmatprep.subr.mxu0 0.0
    %v230 = vand.u32 %v16, 4294901760
    %v231 = vsub.f32 %v16, %v230
    %v232 = vand.u32 %v231, 4294901760
    %v233 = vsub.f32 %v231, %v232
    %v234 = vand.u32 %v233, 4294901760
    %235 = vmatpush1.msra.mxu0 %v234
    %236 = vmatprep.subr.mxu0 0.0
    %237 = vmatpush2.msra.mxu0 0.0
    %238 = vmatprep.subr.mxu0 0.0
    %239 = vmatpush2.msra.mxu0 0.0
    %240 = vmatprep.subr.mxu0 0.0
    %241 = vmatpush2.msra.mxu0 0.0
    %242 = vmatprep.subr.mxu0 0.0
    %243 = vmatpush2.msra.mxu0 0.0
    %244 = vmatprep.subr.mxu0 0.0
    %245 = vmatpush2.msra.mxu0 0.0
    %246 = vmatprep.subr.mxu0 0.0
    %247 = vmatpush2.msra.mxu0 0.0
    %248 = vmatprep.subr.mxu0 0.0
    %249 = vmatpush2.msra.mxu0 0.0
    %250 = vmatprep.subr.mxu0 0.0
    %251 = vmatpush2.msra.mxu0 0.0
    %252 = vmatprep.subr.mxu0 0.0
    %253 = vmatpush2.msra.mxu0 0.0
    %254 = vmatprep.subr.mxu0 0.0
    %255 = vmatpush2.msra.mxu0 0.0
    %256 = vmatprep.subr.mxu0 0.0
    %257 = vmatpush2.msra.mxu0 0.0
    %258 = vmatprep.subr.mxu0 0.0
    %259 = vmatpush2.msra.mxu0 0.0
    %260 = vmatprep.subr.mxu0 0.0
    %261 = vmatpush2.msra.mxu0 0.0
    %262 = vmatprep.subr.mxu0 0.0
    %263 = vmatpush2.msra.mxu0 0.0
    %264 = vmatprep.subr.mxu0 0.0
    %265 = vmatpush2.msra.mxu0 0.0
    %266 = vmatprep.subr.mxu0 0.0
    %267 = vmatpush2.msra.mxu0 0.0
    %268 = vmatprep.mubr.f32.mxu0 0.0
    %v269 = vand.u32 %v15, 4294901760
    %270 = vmatmul.mubr.f32.gmra.mxu0 %v269
    %v271 = vpop.f32.mrf.mxu0
    %v272 = vadd.f32 %v121, %v271
    %v273 = vpop.f32.mrf.mxu0
    %274 = vdwg.mxu0
    %275 = vmatprep.subr.mxu0 0.0
    %v276 = vand.u32 %v31, 4294901760
    %v277 = vsub.f32 %v31, %v276
    %278 = vmatpush1.msra.mxu0 %v277
    %279 = vmatprep.subr.mxu0 0.0
    %v280 = vand.u32 %v30, 4294901760
    %v281 = vsub.f32 %v30, %v280
    %282 = vmatpush1.msra.mxu0 %v281
    %283 = vmatprep.subr.mxu0 0.0
    %v284 = vand.u32 %v29, 4294901760
    %v285 = vsub.f32 %v29, %v284
    %286 = vmatpush1.msra.mxu0 %v285
    %287 = vmatprep.subr.mxu0 0.0
    %v288 = vand.u32 %v28, 4294901760
    %v289 = vsub.f32 %v28, %v288
    %290 = vmatpush1.msra.mxu0 %v289
    %291 = vmatprep.subr.mxu0 0.0
    %v292 = vand.u32 %v27, 4294901760
    %v293 = vsub.f32 %v27, %v292
    %294 = vmatpush1.msra.mxu0 %v293
    %295 = vmatprep.subr.mxu0 0.0
    %v296 = vand.u32 %v26, 4294901760
    %v297 = vsub.f32 %v26, %v296
    %298 = vmatpush1.msra.mxu0 %v297
    %299 = vmatprep.subr.mxu0 0.0
    %v300 = vand.u32 %v25, 4294901760
    %v301 = vsub.f32 %v25, %v300
    %302 = vmatpush1.msra.mxu0 %v301
    %303 = vmatprep.subr.mxu0 0.0
    %v304 = vand.u32 %v24, 4294901760
    %v305 = vsub.f32 %v24, %v304
    %306 = vmatpush1.msra.mxu0 %v305
    %307 = vmatprep.subr.mxu0 0.0
    %v308 = vand.u32 %v23, 4294901760
    %v309 = vsub.f32 %v23, %v308
    %310 = vmatpush1.msra.mxu0 %v309
    %311 = vmatprep.subr.mxu0 0.0
    %v312 = vand.u32 %v22, 4294901760
    %v313 = vsub.f32 %v22, %v312
    %314 = vmatpush1.msra.mxu0 %v313
    %315 = vmatprep.subr.mxu0 0.0
    %v316 = vand.u32 %v21, 4294901760
    %v317 = vsub.f32 %v21, %v316
    %318 = vmatpush1.msra.mxu0 %v317
    %319 = vmatprep.subr.mxu0 0.0
    %v320 = vand.u32 %v20, 4294901760
    %v321 = vsub.f32 %v20, %v320
    %322 = vmatpush1.msra.mxu0 %v321
    %323 = vmatprep.subr.mxu0 0.0
    %v324 = vand.u32 %v19, 4294901760
    %v325 = vsub.f32 %v19, %v324
    %326 = vmatpush1.msra.mxu0 %v325
    %327 = vmatprep.subr.mxu0 0.0
    %v328 = vand.u32 %v18, 4294901760
    %v329 = vsub.f32 %v18, %v328
    %330 = vmatpush1.msra.mxu0 %v329
    %331 = vmatprep.subr.mxu0 0.0
    %v332 = vand.u32 %v17, 4294901760
    %v333 = vsub.f32 %v17, %v332
    %334 = vmatpush1.msra.mxu0 %v333
    %335 = vmatprep.subr.mxu0 0.0
    %v336 = vand.u32 %v16, 4294901760
    %v337 = vsub.f32 %v16, %v336
    %338 = vmatpush1.msra.mxu0 %v337
    %339 = vmatprep.subr.mxu0 0.0
    %340 = vmatpush2.msra.mxu0 0.0
    %341 = vmatprep.subr.mxu0 0.0
    %342 = vmatpush2.msra.mxu0 0.0
    %343 = vmatprep.subr.mxu0 0.0
    %344 = vmatpush2.msra.mxu0 0.0
    %345 = vmatprep.subr.mxu0 0.0
    %346 = vmatpush2.msra.mxu0 0.0
    %347 = vmatprep.subr.mxu0 0.0
    %348 = vmatpush2.msra.mxu0 0.0
    %349 = vmatprep.subr.mxu0 0.0
    %350 = vmatpush2.msra.mxu0 0.0
    %351 = vmatprep.subr.mxu0 0.0
    %352 = vmatpush2.msra.mxu0 0.0
    %353 = vmatprep.subr.mxu0 0.0
    %354 = vmatpush2.msra.mxu0 0.0
    %355 = vmatprep.subr.mxu0 0.0
    %356 = vmatpush2.msra.mxu0 0.0
    %357 = vmatprep.subr.mxu0 0.0
    %358 = vmatpush2.msra.mxu0 0.0
    %359 = vmatprep.subr.mxu0 0.0
    %360 = vmatpush2.msra.mxu0 0.0
    %361 = vmatprep.subr.mxu0 0.0
    %362 = vmatpush2.msra.mxu0 0.0
    %363 = vmatprep.subr.mxu0 0.0
    %364 = vmatpush2.msra.mxu0 0.0
    %365 = vmatprep.subr.mxu0 0.0
    %366 = vmatpush2.msra.mxu0 0.0
    %367 = vmatprep.subr.mxu0 0.0
    %368 = vmatpush2.msra.mxu0 0.0
    %369 = vmatprep.subr.mxu0 0.0
    %370 = vmatpush2.msra.mxu0 0.0
    %371 = vmatprep.mubr.f32.mxu0 0.0
    %v372 = vand.u32 %v15, 4294901760
    %v373 = vsub.f32 %v15, %v372
    %374 = vmatmul.mubr.f32.gmra.mxu0 %v373
    %v375 = vpop.f32.mrf.mxu0
    %v376 = vadd.f32 %v272, %v375
    %v377 = vpop.f32.mrf.mxu0
    %378 = vdwg.mxu0
    %379 = vmatprep.subr.mxu0 0.0
    %v380 = vand.u32 %v31, 4294901760
    %381 = vmatpush1.msra.mxu0 %v380
    %382 = vmatprep.subr.mxu0 0.0
    %v383 = vand.u32 %v30, 4294901760
    %384 = vmatpush1.msra.mxu0 %v383
    %385 = vmatprep.subr.mxu0 0.0
    %v386 = vand.u32 %v29, 4294901760
    %387 = vmatpush1.msra.mxu0 %v386
    %388 = vmatprep.subr.mxu0 0.0
    %v389 = vand.u32 %v28, 4294901760
    %390 = vmatpush1.msra.mxu0 %v389
    %391 = vmatprep.subr.mxu0 0.0
    %v392 = vand.u32 %v27, 4294901760
    %393 = vmatpush1.msra.mxu0 %v392
    %394 = vmatprep.subr.mxu0 0.0
    %v395 = vand.u32 %v26, 4294901760
    %396 = vmatpush1.msra.mxu0 %v395
    %397 = vmatprep.subr.mxu0 0.0
    %v398 = vand.u32 %v25, 4294901760
    %399 = vmatpush1.msra.mxu0 %v398
    %400 = vmatprep.subr.mxu0 0.0
    %v401 = vand.u32 %v24, 4294901760
    %402 = vmatpush1.msra.mxu0 %v401
    %403 = vmatprep.subr.mxu0 0.0
    %v404 = vand.u32 %v23, 4294901760
    %405 = vmatpush1.msra.mxu0 %v404
    %406 = vmatprep.subr.mxu0 0.0
    %v407 = vand.u32 %v22, 4294901760
    %408 = vmatpush1.msra.mxu0 %v407
    %409 = vmatprep.subr.mxu0 0.0
    %v410 = vand.u32 %v21, 4294901760
    %411 = vmatpush1.msra.mxu0 %v410
    %412 = vmatprep.subr.mxu0 0.0
    %v413 = vand.u32 %v20, 4294901760
    %414 = vmatpush1.msra.mxu0 %v413
    %415 = vmatprep.subr.mxu0 0.0
    %v416 = vand.u32 %v19, 4294901760
    %417 = vmatpush1.msra.mxu0 %v416
    %418 = vmatprep.subr.mxu0 0.0
    %v419 = vand.u32 %v18, 4294901760
    %420 = vmatpush1.msra.mxu0 %v419
    %421 = vmatprep.subr.mxu0 0.0
    %v422 = vand.u32 %v17, 4294901760
    %423 = vmatpush1.msra.mxu0 %v422
    %424 = vmatprep.subr.mxu0 0.0
    %v425 = vand.u32 %v16, 4294901760
    %426 = vmatpush1.msra.mxu0 %v425
    %427 = vmatprep.subr.mxu0 0.0
    %428 = vmatpush2.msra.mxu0 0.0
    %429 = vmatprep.subr.mxu0 0.0
    %430 = vmatpush2.msra.mxu0 0.0
    %431 = vmatprep.subr.mxu0 0.0
    %432 = vmatpush2.msra.mxu0 0.0
    %433 = vmatprep.subr.mxu0 0.0
    %434 = vmatpush2.msra.mxu0 0.0
    %435 = vmatprep.subr.mxu0 0.0
    %436 = vmatpush2.msra.mxu0 0.0
    %437 = vmatprep.subr.mxu0 0.0
    %438 = vmatpush2.msra.mxu0 0.0
    %439 = vmatprep.subr.mxu0 0.0
    %440 = vmatpush2.msra.mxu0 0.0
    %441 = vmatprep.subr.mxu0 0.0
    %442 = vmatpush2.msra.mxu0 0.0
    %443 = vmatprep.subr.mxu0 0.0
    %444 = vmatpush2.msra.mxu0 0.0
    %445 = vmatprep.subr.mxu0 0.0
    %446 = vmatpush2.msra.mxu0 0.0
    %447 = vmatprep.subr.mxu0 0.0
    %448 = vmatpush2.msra.mxu0 0.0
    %449 = vmatprep.subr.mxu0 0.0
    %450 = vmatpush2.msra.mxu0 0.0
    %451 = vmatprep.subr.mxu0 0.0
    %452 = vmatpush2.msra.mxu0 0.0
    %453 = vmatprep.subr.mxu0 0.0
    %454 = vmatpush2.msra.mxu0 0.0
    %455 = vmatprep.subr.mxu0 0.0
    %456 = vmatpush2.msra.mxu0 0.0
    %457 = vmatprep.subr.mxu0 0.0
    %458 = vmatpush2.msra.mxu0 0.0
    %459 = vmatprep.mubr.f32.mxu0 0.0
    %v460 = vand.u32 %v15, 4294901760
    %v461 = vsub.f32 %v15, %v460
    %v462 = vand.u32 %v461, 4294901760
    %463 = vmatmul.mubr.f32.gmra.mxu0 %v462
    %v464 = vpop.f32.mrf.mxu0
    %v465 = vadd.f32 %v376, %v464
    %v466 = vpop.f32.mrf.mxu0
    %467 = vdwg.mxu0
    %468 = vmatprep.subr.mxu0 0.0
    %v469 = vand.u32 %v31, 4294901760
    %v470 = vsub.f32 %v31, %v469
    %v471 = vand.u32 %v470, 4294901760
    %472 = vmatpush1.msra.mxu0 %v471
    %473 = vmatprep.subr.mxu0 0.0
    %v474 = vand.u32 %v30, 4294901760
    %v475 = vsub.f32 %v30, %v474
    %v476 = vand.u32 %v475, 4294901760
    %477 = vmatpush1.msra.mxu0 %v476
    %478 = vmatprep.subr.mxu0 0.0
    %v479 = vand.u32 %v29, 4294901760
    %v480 = vsub.f32 %v29, %v479
    %v481 = vand.u32 %v480, 4294901760
    %482 = vmatpush1.msra.mxu0 %v481
    %483 = vmatprep.subr.mxu0 0.0
    %v484 = vand.u32 %v28, 4294901760
    %v485 = vsub.f32 %v28, %v484
    %v486 = vand.u32 %v485, 4294901760
    %487 = vmatpush1.msra.mxu0 %v486
    %488 = vmatprep.subr.mxu0 0.0
    %v489 = vand.u32 %v27, 4294901760
    %v490 = vsub.f32 %v27, %v489
    %v491 = vand.u32 %v490, 4294901760
    %492 = vmatpush1.msra.mxu0 %v491
    %493 = vmatprep.subr.mxu0 0.0
    %v494 = vand.u32 %v26, 4294901760
    %v495 = vsub.f32 %v26, %v494
    %v496 = vand.u32 %v495, 4294901760
    %497 = vmatpush1.msra.mxu0 %v496
    %498 = vmatprep.subr.mxu0 0.0
    %v499 = vand.u32 %v25, 4294901760
    %v500 = vsub.f32 %v25, %v499
    %v501 = vand.u32 %v500, 4294901760
    %502 = vmatpush1.msra.mxu0 %v501
    %503 = vmatprep.subr.mxu0 0.0
    %v504 = vand.u32 %v24, 4294901760
    %v505 = vsub.f32 %v24, %v504
    %v506 = vand.u32 %v505, 4294901760
    %507 = vmatpush1.msra.mxu0 %v506
    %508 = vmatprep.subr.mxu0 0.0
    %v509 = vand.u32 %v23, 4294901760
    %v510 = vsub.f32 %v23, %v509
    %v511 = vand.u32 %v510, 4294901760
    %512 = vmatpush1.msra.mxu0 %v511
    %513 = vmatprep.subr.mxu0 0.0
    %v514 = vand.u32 %v22, 4294901760
    %v515 = vsub.f32 %v22, %v514
    %v516 = vand.u32 %v515, 4294901760
    %517 = vmatpush1.msra.mxu0 %v516
    %518 = vmatprep.subr.mxu0 0.0
    %v519 = vand.u32 %v21, 4294901760
    %v520 = vsub.f32 %v21, %v519
    %v521 = vand.u32 %v520, 4294901760
    %522 = vmatpush1.msra.mxu0 %v521
    %523 = vmatprep.subr.mxu0 0.0
    %v524 = vand.u32 %v20, 4294901760
    %v525 = vsub.f32 %v20, %v524
    %v526 = vand.u32 %v525, 4294901760
    %527 = vmatpush1.msra.mxu0 %v526
    %528 = vmatprep.subr.mxu0 0.0
    %v529 = vand.u32 %v19, 4294901760
    %v530 = vsub.f32 %v19, %v529
    %v531 = vand.u32 %v530, 4294901760
    %532 = vmatpush1.msra.mxu0 %v531
    %533 = vmatprep.subr.mxu0 0.0
    %v534 = vand.u32 %v18, 4294901760
    %v535 = vsub.f32 %v18, %v534
    %v536 = vand.u32 %v535, 4294901760
    %537 = vmatpush1.msra.mxu0 %v536
    %538 = vmatprep.subr.mxu0 0.0
    %v539 = vand.u32 %v17, 4294901760
    %v540 = vsub.f32 %v17, %v539
    %v541 = vand.u32 %v540, 4294901760
    %542 = vmatpush1.msra.mxu0 %v541
    %543 = vmatprep.subr.mxu0 0.0
    %v544 = vand.u32 %v16, 4294901760
    %v545 = vsub.f32 %v16, %v544
    %v546 = vand.u32 %v545, 4294901760
    %547 = vmatpush1.msra.mxu0 %v546
    %548 = vmatprep.subr.mxu0 0.0
    %549 = vmatpush2.msra.mxu0 0.0
    %550 = vmatprep.subr.mxu0 0.0
    %551 = vmatpush2.msra.mxu0 0.0
    %552 = vmatprep.subr.mxu0 0.0
    %553 = vmatpush2.msra.mxu0 0.0
    %554 = vmatprep.subr.mxu0 0.0
    %555 = vmatpush2.msra.mxu0 0.0
    %556 = vmatprep.subr.mxu0 0.0
    %557 = vmatpush2.msra.mxu0 0.0
    %558 = vmatprep.subr.mxu0 0.0
    %559 = vmatpush2.msra.mxu0 0.0
    %560 = vmatprep.subr.mxu0 0.0
    %561 = vmatpush2.msra.mxu0 0.0
    %562 = vmatprep.subr.mxu0 0.0
    %563 = vmatpush2.msra.mxu0 0.0
    %564 = vmatprep.subr.mxu0 0.0
    %565 = vmatpush2.msra.mxu0 0.0
    %566 = vmatprep.subr.mxu0 0.0
    %567 = vmatpush2.msra.mxu0 0.0
    %568 = vmatprep.subr.mxu0 0.0
    %569 = vmatpush2.msra.mxu0 0.0
    %570 = vmatprep.subr.mxu0 0.0
    %571 = vmatpush2.msra.mxu0 0.0
    %572 = vmatprep.subr.mxu0 0.0
    %573 = vmatpush2.msra.mxu0 0.0
    %574 = vmatprep.subr.mxu0 0.0
    %575 = vmatpush2.msra.mxu0 0.0
    %576 = vmatprep.subr.mxu0 0.0
    %577 = vmatpush2.msra.mxu0 0.0
    %578 = vmatprep.subr.mxu0 0.0
    %579 = vmatpush2.msra.mxu0 0.0
    %580 = vmatprep.mubr.f32.mxu0 0.0
    %v581 = vand.u32 %v15, 4294901760
    %582 = vmatmul.mubr.f32.gmra.mxu0 %v581
    %v583 = vpop.f32.mrf.mxu0
    %v584 = vadd.f32 %v465, %v583
    %v585 = vpop.f32.mrf.mxu0
    %586 = vdwg.mxu0
    %587 = vmatprep.subr.mxu0 0.0
    %v588 = vand.u32 %v31, 4294901760
    %589 = vmatpush1.msra.mxu0 %v588
    %590 = vmatprep.subr.mxu0 0.0
    %v591 = vand.u32 %v30, 4294901760
    %592 = vmatpush1.msra.mxu0 %v591
    %593 = vmatprep.subr.mxu0 0.0
    %v594 = vand.u32 %v29, 4294901760
    %595 = vmatpush1.msra.mxu0 %v594
    %596 = vmatprep.subr.mxu0 0.0
    %v597 = vand.u32 %v28, 4294901760
    %598 = vmatpush1.msra.mxu0 %v597
    %599 = vmatprep.subr.mxu0 0.0
    %v600 = vand.u32 %v27, 4294901760
    %601 = vmatpush1.msra.mxu0 %v600
    %602 = vmatprep.subr.mxu0 0.0
    %v603 = vand.u32 %v26, 4294901760
    %604 = vmatpush1.msra.mxu0 %v603
    %605 = vmatprep.subr.mxu0 0.0
    %v606 = vand.u32 %v25, 4294901760
    %607 = vmatpush1.msra.mxu0 %v606
    %608 = vmatprep.subr.mxu0 0.0
    %v609 = vand.u32 %v24, 4294901760
    %610 = vmatpush1.msra.mxu0 %v609
    %611 = vmatprep.subr.mxu0 0.0
    %v612 = vand.u32 %v23, 4294901760
    %613 = vmatpush1.msra.mxu0 %v612
    %614 = vmatprep.subr.mxu0 0.0
    %v615 = vand.u32 %v22, 4294901760
    %616 = vmatpush1.msra.mxu0 %v615
    %617 = vmatprep.subr.mxu0 0.0
    %v618 = vand.u32 %v21, 4294901760
    %619 = vmatpush1.msra.mxu0 %v618
    %620 = vmatprep.subr.mxu0 0.0
    %v621 = vand.u32 %v20, 4294901760
    %622 = vmatpush1.msra.mxu0 %v621
    %623 = vmatprep.subr.mxu0 0.0
    %v624 = vand.u32 %v19, 4294901760
    %625 = vmatpush1.msra.mxu0 %v624
    %626 = vmatprep.subr.mxu0 0.0
    %v627 = vand.u32 %v18, 4294901760
    %628 = vmatpush1.msra.mxu0 %v627
    %629 = vmatprep.subr.mxu0 0.0
    %v630 = vand.u32 %v17, 4294901760
    %631 = vmatpush1.msra.mxu0 %v630
    %632 = vmatprep.subr.mxu0 0.0
    %v633 = vand.u32 %v16, 4294901760
    %634 = vmatpush1.msra.mxu0 %v633
    %635 = vmatprep.subr.mxu0 0.0
    %636 = vmatpush2.msra.mxu0 0.0
    %637 = vmatprep.subr.mxu0 0.0
    %638 = vmatpush2.msra.mxu0 0.0
    %639 = vmatprep.subr.mxu0 0.0
    %640 = vmatpush2.msra.mxu0 0.0
    %641 = vmatprep.subr.mxu0 0.0
    %642 = vmatpush2.msra.mxu0 0.0
    %643 = vmatprep.subr.mxu0 0.0
    %644 = vmatpush2.msra.mxu0 0.0
    %645 = vmatprep.subr.mxu0 0.0
    %646 = vmatpush2.msra.mxu0 0.0
    %647 = vmatprep.subr.mxu0 0.0
    %648 = vmatpush2.msra.mxu0 0.0
    %649 = vmatprep.subr.mxu0 0.0
    %650 = vmatpush2.msra.mxu0 0.0
    %651 = vmatprep.subr.mxu0 0.0
    %652 = vmatpush2.msra.mxu0 0.0
    %653 = vmatprep.subr.mxu0 0.0
    %654 = vmatpush2.msra.mxu0 0.0
    %655 = vmatprep.subr.mxu0 0.0
    %656 = vmatpush2.msra.mxu0 0.0
    %657 = vmatprep.subr.mxu0 0.0
    %658 = vmatpush2.msra.mxu0 0.0
    %659 = vmatprep.subr.mxu0 0.0
    %660 = vmatpush2.msra.mxu0 0.0
    %661 = vmatprep.subr.mxu0 0.0
    %662 = vmatpush2.msra.mxu0 0.0
    %663 = vmatprep.subr.mxu0 0.0
    %664 = vmatpush2.msra.mxu0 0.0
    %665 = vmatprep.subr.mxu0 0.0
    %666 = vmatpush2.msra.mxu0 0.0
    %667 = vmatprep.mubr.f32.mxu0 0.0
    %v668 = vand.u32 %v15, 4294901760
    %669 = vmatmul.mubr.f32.gmra.mxu0 %v668
    %v670 = vpop.f32.mrf.mxu0
    %v671 = vadd.f32 %v584, %v670
    %v672 = vpop.f32.mrf.mxu0
    %673 = vdwg.mxu0
    %v674 = vmul.f32 %v15, %v15
    %675 = vmatprep.subr.mxu0 0.0
    %v676 = vand.u32 %v31, 4294901760
    %677 = vmatpush1.msra.mxu0 %v676
    %678 = vmatprep.subr.mxu0 0.0
    %v679 = vand.u32 %v30, 4294901760
    %680 = vmatpush1.msra.mxu0 %v679
    %681 = vmatprep.subr.mxu0 0.0
    %v682 = vand.u32 %v29, 4294901760
    %683 = vmatpush1.msra.mxu0 %v682
    %684 = vmatprep.subr.mxu0 0.0
    %v685 = vand.u32 %v28, 4294901760
    %686 = vmatpush1.msra.mxu0 %v685
    %687 = vmatprep.subr.mxu0 0.0
    %v688 = vand.u32 %v27, 4294901760
    %689 = vmatpush1.msra.mxu0 %v688
    %690 = vmatprep.subr.mxu0 0.0
    %v691 = vand.u32 %v26, 4294901760
    %692 = vmatpush1.msra.mxu0 %v691
    %693 = vmatprep.subr.mxu0 0.0
    %v694 = vand.u32 %v25, 4294901760
    %695 = vmatpush1.msra.mxu0 %v694
    %696 = vmatprep.subr.mxu0 0.0
    %v697 = vand.u32 %v24, 4294901760
    %698 = vmatpush1.msra.mxu0 %v697
    %699 = vmatprep.subr.mxu0 0.0
    %v700 = vand.u32 %v23, 4294901760
    %701 = vmatpush1.msra.mxu0 %v700
    %702 = vmatprep.subr.mxu0 0.0
    %v703 = vand.u32 %v22, 4294901760
    %704 = vmatpush1.msra.mxu0 %v703
    %705 = vmatprep.subr.mxu0 0.0
    %v706 = vand.u32 %v21, 4294901760
    %707 = vmatpush1.msra.mxu0 %v706
    %708 = vmatprep.subr.mxu0 0.0
    %v709 = vand.u32 %v20, 4294901760
    %710 = vmatpush1.msra.mxu0 %v709
    %711 = vmatprep.subr.mxu0 0.0
    %v712 = vand.u32 %v19, 4294901760
    %713 = vmatpush1.msra.mxu0 %v712
    %714 = vmatprep.subr.mxu0 0.0
    %v715 = vand.u32 %v18, 4294901760
    %716 = vmatpush1.msra.mxu0 %v715
    %717 = vmatprep.subr.mxu0 0.0
    %v718 = vand.u32 %v17, 4294901760
    %719 = vmatpush1.msra.mxu0 %v718
    %720 = vmatprep.subr.mxu0 0.0
    %v721 = vand.u32 %v16, 4294901760
    %722 = vmatpush1.msra.mxu0 %v721
    %723 = vmatprep.subr.mxu0 0.0
    %724 = vmatpush2.msra.mxu0 0.0
    %725 = vmatprep.subr.mxu0 0.0
    %726 = vmatpush2.msra.mxu0 0.0
    %727 = vmatprep.subr.mxu0 0.0
    %728 = vmatpush2.msra.mxu0 0.0
    %729 = vmatprep.subr.mxu0 0.0
    %730 = vmatpush2.msra.mxu0 0.0
    %731 = vmatprep.subr.mxu0 0.0
    %732 = vmatpush2.msra.mxu0 0.0
    %733 = vmatprep.subr.mxu0 0.0
    %734 = vmatpush2.msra.mxu0 0.0
    %735 = vmatprep.subr.mxu0 0.0
    %736 = vmatpush2.msra.mxu0 0.0
    %737 = vmatprep.subr.mxu0 0.0
    %738 = vmatpush2.msra.mxu0 0.0
    %739 = vmatprep.subr.mxu0 0.0
    %740 = vmatpush2.msra.mxu0 0.0
    %741 = vmatprep.subr.mxu0 0.0
    %742 = vmatpush2.msra.mxu0 0.0
    %743 = vmatprep.subr.mxu0 0.0
    %744 = vmatpush2.msra.mxu0 0.0
    %745 = vmatprep.subr.mxu0 0.0
    %746 = vmatpush2.msra.mxu0 0.0
    %747 = vmatprep.subr.mxu0 0.0
    %748 = vmatpush2.msra.mxu0 0.0
    %749 = vmatprep.subr.mxu0 0.0
    %750 = vmatpush2.msra.mxu0 0.0
    %751 = vmatprep.subr.mxu0 0.0
    %752 = vmatpush2.msra.mxu0 0.0
    %753 = vmatprep.subr.mxu0 0.0
    %754 = vmatpush2.msra.mxu0 0.0
    %755 = vmatprep.mubr.f32.mxu0 0.0
    %v756 = vand.u32 %v674, 4294901760
    %v757 = vsub.f32 %v674, %v756
    %v758 = vand.u32 %v757, 4294901760
    %v759 = vsub.f32 %v757, %v758
    %v760 = vand.u32 %v759, 4294901760
    %761 = vmatmul.mubr.f32.gmra.mxu0 %v760
    %v762 = vpop.f32.mrf.mxu0
    %v763 = vadd.f32 0.0, %v762
    %v764 = vpop.f32.mrf.mxu0
    %765 = vdwg.mxu0
    %766 = vmatprep.subr.mxu0 0.0
    %v767 = vand.u32 %v31, 4294901760
    %v768 = vsub.f32 %v31, %v767
    %v769 = vand.u32 %v768, 4294901760
    %v770 = vsub.f32 %v768, %v769
    %v771 = vand.u32 %v770, 4294901760
    %772 = vmatpush1.msra.mxu0 %v771
    %773 = vmatprep.subr.mxu0 0.0
    %v774 = vand.u32 %v30, 4294901760
    %v775 = vsub.f32 %v30, %v774
    %v776 = vand.u32 %v775, 4294901760
    %v777 = vsub.f32 %v775, %v776
    %v778 = vand.u32 %v777, 4294901760
    %779 = vmatpush1.msra.mxu0 %v778
    %780 = vmatprep.subr.mxu0 0.0
    %v781 = vand.u32 %v29, 4294901760
    %v782 = vsub.f32 %v29, %v781
    %v783 = vand.u32 %v782, 4294901760
    %v784 = vsub.f32 %v782, %v783
    %v785 = vand.u32 %v784, 4294901760
    %786 = vmatpush1.msra.mxu0 %v785
    %787 = vmatprep.subr.mxu0 0.0
    %v788 = vand.u32 %v28, 4294901760
    %v789 = vsub.f32 %v28, %v788
    %v790 = vand.u32 %v789, 4294901760
    %v791 = vsub.f32 %v789, %v790
    %v792 = vand.u32 %v791, 4294901760
    %793 = vmatpush1.msra.mxu0 %v792
    %794 = vmatprep.subr.mxu0 0.0
    %v795 = vand.u32 %v27, 4294901760
    %v796 = vsub.f32 %v27, %v795
    %v797 = vand.u32 %v796, 4294901760
    %v798 = vsub.f32 %v796, %v797
    %v799 = vand.u32 %v798, 4294901760
    %800 = vmatpush1.msra.mxu0 %v799
    %801 = vmatprep.subr.mxu0 0.0
    %v802 = vand.u32 %v26, 4294901760
    %v803 = vsub.f32 %v26, %v802
    %v804 = vand.u32 %v803, 4294901760
    %v805 = vsub.f32 %v803, %v804
    %v806 = vand.u32 %v805, 4294901760
    %807 = vmatpush1.msra.mxu0 %v806
    %808 = vmatprep.subr.mxu0 0.0
    %v809 = vand.u32 %v25, 4294901760
    %v810 = vsub.f32 %v25, %v809
    %v811 = vand.u32 %v810, 4294901760
    %v812 = vsub.f32 %v810, %v811
    %v813 = vand.u32 %v812, 4294901760
    %814 = vmatpush1.msra.mxu0 %v813
    %815 = vmatprep.subr.mxu0 0.0
    %v816 = vand.u32 %v24, 4294901760
    %v817 = vsub.f32 %v24, %v816
    %v818 = vand.u32 %v817, 4294901760
    %v819 = vsub.f32 %v817, %v818
    %v820 = vand.u32 %v819, 4294901760
    %821 = vmatpush1.msra.mxu0 %v820
    %822 = vmatprep.subr.mxu0 0.0
    %v823 = vand.u32 %v23, 4294901760
    %v824 = vsub.f32 %v23, %v823
    %v825 = vand.u32 %v824, 4294901760
    %v826 = vsub.f32 %v824, %v825
    %v827 = vand.u32 %v826, 4294901760
    %828 = vmatpush1.msra.mxu0 %v827
    %829 = vmatprep.subr.mxu0 0.0
    %v830 = vand.u32 %v22, 4294901760
    %v831 = vsub.f32 %v22, %v830
    %v832 = vand.u32 %v831, 4294901760
    %v833 = vsub.f32 %v831, %v832
    %v834 = vand.u32 %v833, 4294901760
    %835 = vmatpush1.msra.mxu0 %v834
    %836 = vmatprep.subr.mxu0 0.0
    %v837 = vand.u32 %v21, 4294901760
    %v838 = vsub.f32 %v21, %v837
    %v839 = vand.u32 %v838, 4294901760
    %v840 = vsub.f32 %v838, %v839
    %v841 = vand.u32 %v840, 4294901760
    %842 = vmatpush1.msra.mxu0 %v841
    %843 = vmatprep.subr.mxu0 0.0
    %v844 = vand.u32 %v20, 4294901760
    %v845 = vsub.f32 %v20, %v844
    %v846 = vand.u32 %v845, 4294901760
    %v847 = vsub.f32 %v845, %v846
    %v848 = vand.u32 %v847, 4294901760
    %849 = vmatpush1.msra.mxu0 %v848
    %850 = vmatprep.subr.mxu0 0.0
    %v851 = vand.u32 %v19, 4294901760
    %v852 = vsub.f32 %v19, %v851
    %v853 = vand.u32 %v852, 4294901760
    %v854 = vsub.f32 %v852, %v853
    %v855 = vand.u32 %v854, 4294901760
    %856 = vmatpush1.msra.mxu0 %v855
    %857 = vmatprep.subr.mxu0 0.0
    %v858 = vand.u32 %v18, 4294901760
    %v859 = vsub.f32 %v18, %v858
    %v860 = vand.u32 %v859, 4294901760
    %v861 = vsub.f32 %v859, %v860
    %v862 = vand.u32 %v861, 4294901760
    %863 = vmatpush1.msra.mxu0 %v862
    %864 = vmatprep.subr.mxu0 0.0
    %v865 = vand.u32 %v17, 4294901760
    %v866 = vsub.f32 %v17, %v865
    %v867 = vand.u32 %v866, 4294901760
    %v868 = vsub.f32 %v866, %v867
    %v869 = vand.u32 %v868, 4294901760
    %870 = vmatpush1.msra.mxu0 %v869
    %871 = vmatprep.subr.mxu0 0.0
    %v872 = vand.u32 %v16, 4294901760
    %v873 = vsub.f32 %v16, %v872
    %v874 = vand.u32 %v873, 4294901760
    %v875 = vsub.f32 %v873, %v874
    %v876 = vand.u32 %v875, 4294901760
    %877 = vmatpush1.msra.mxu0 %v876
    %878 = vmatprep.subr.mxu0 0.0
    %879 = vmatpush2.msra.mxu0 0.0
    %880 = vmatprep.subr.mxu0 0.0
    %881 = vmatpush2.msra.mxu0 0.0
    %882 = vmatprep.subr.mxu0 0.0
    %883 = vmatpush2.msra.mxu0 0.0
    %884 = vmatprep.subr.mxu0 0.0
    %885 = vmatpush2.msra.mxu0 0.0
    %886 = vmatprep.subr.mxu0 0.0
    %887 = vmatpush2.msra.mxu0 0.0
    %888 = vmatprep.subr.mxu0 0.0
    %889 = vmatpush2.msra.mxu0 0.0
    %890 = vmatprep.subr.mxu0 0.0
    %891 = vmatpush2.msra.mxu0 0.0
    %892 = vmatprep.subr.mxu0 0.0
    %893 = vmatpush2.msra.mxu0 0.0
    %894 = vmatprep.subr.mxu0 0.0
    %895 = vmatpush2.msra.mxu0 0.0
    %896 = vmatprep.subr.mxu0 0.0
    %897 = vmatpush2.msra.mxu0 0.0
    %898 = vmatprep.subr.mxu0 0.0
    %899 = vmatpush2.msra.mxu0 0.0
    %900 = vmatprep.subr.mxu0 0.0
    %901 = vmatpush2.msra.mxu0 0.0
    %902 = vmatprep.subr.mxu0 0.0
    %903 = vmatpush2.msra.mxu0 0.0
    %904 = vmatprep.subr.mxu0 0.0
    %905 = vmatpush2.msra.mxu0 0.0
    %906 = vmatprep.subr.mxu0 0.0
    %907 = vmatpush2.msra.mxu0 0.0
    %908 = vmatprep.subr.mxu0 0.0
    %909 = vmatpush2.msra.mxu0 0.0
    %910 = vmatprep.mubr.f32.mxu0 0.0
    %v911 = vand.u32 %v674, 4294901760
    %912 = vmatmul.mubr.f32.gmra.mxu0 %v911
    %v913 = vpop.f32.mrf.mxu0
    %v914 = vadd.f32 %v763, %v913
    %v915 = vpop.f32.mrf.mxu0
    %916 = vdwg.mxu0
    %917 = vmatprep.subr.mxu0 0.0
    %v918 = vand.u32 %v31, 4294901760
    %v919 = vsub.f32 %v31, %v918
    %920 = vmatpush1.msra.mxu0 %v919
    %921 = vmatprep.subr.mxu0 0.0
    %v922 = vand.u32 %v30, 4294901760
    %v923 = vsub.f32 %v30, %v922
    %924 = vmatpush1.msra.mxu0 %v923
    %925 = vmatprep.subr.mxu0 0.0
    %v926 = vand.u32 %v29, 4294901760
    %v927 = vsub.f32 %v29, %v926
    %928 = vmatpush1.msra.mxu0 %v927
    %929 = vmatprep.subr.mxu0 0.0
    %v930 = vand.u32 %v28, 4294901760
    %v931 = vsub.f32 %v28, %v930
    %932 = vmatpush1.msra.mxu0 %v931
    %933 = vmatprep.subr.mxu0 0.0
    %v934 = vand.u32 %v27, 4294901760
    %v935 = vsub.f32 %v27, %v934
    %936 = vmatpush1.msra.mxu0 %v935
    %937 = vmatprep.subr.mxu0 0.0
    %v938 = vand.u32 %v26, 4294901760
    %v939 = vsub.f32 %v26, %v938
    %940 = vmatpush1.msra.mxu0 %v939
    %941 = vmatprep.subr.mxu0 0.0
    %v942 = vand.u32 %v25, 4294901760
    %v943 = vsub.f32 %v25, %v942
    %944 = vmatpush1.msra.mxu0 %v943
    %945 = vmatprep.subr.mxu0 0.0
    %v946 = vand.u32 %v24, 4294901760
    %v947 = vsub.f32 %v24, %v946
    %948 = vmatpush1.msra.mxu0 %v947
    %949 = vmatprep.subr.mxu0 0.0
    %v950 = vand.u32 %v23, 4294901760
    %v951 = vsub.f32 %v23, %v950
    %952 = vmatpush1.msra.mxu0 %v951
    %953 = vmatprep.subr.mxu0 0.0
    %v954 = vand.u32 %v22, 4294901760
    %v955 = vsub.f32 %v22, %v954
    %956 = vmatpush1.msra.mxu0 %v955
    %957 = vmatprep.subr.mxu0 0.0
    %v958 = vand.u32 %v21, 4294901760
    %v959 = vsub.f32 %v21, %v958
    %960 = vmatpush1.msra.mxu0 %v959
    %961 = vmatprep.subr.mxu0 0.0
    %v962 = vand.u32 %v20, 4294901760
    %v963 = vsub.f32 %v20, %v962
    %964 = vmatpush1.msra.mxu0 %v963
    %965 = vmatprep.subr.mxu0 0.0
    %v966 = vand.u32 %v19, 4294901760
    %v967 = vsub.f32 %v19, %v966
    %968 = vmatpush1.msra.mxu0 %v967
    %969 = vmatprep.subr.mxu0 0.0
    %v970 = vand.u32 %v18, 4294901760
    %v971 = vsub.f32 %v18, %v970
    %972 = vmatpush1.msra.mxu0 %v971
    %973 = vmatprep.subr.mxu0 0.0
    %v974 = vand.u32 %v17, 4294901760
    %v975 = vsub.f32 %v17, %v974
    %976 = vmatpush1.msra.mxu0 %v975
    %977 = vmatprep.subr.mxu0 0.0
    %v978 = vand.u32 %v16, 4294901760
    %v979 = vsub.f32 %v16, %v978
    %980 = vmatpush1.msra.mxu0 %v979
    %981 = vmatprep.subr.mxu0 0.0
    %982 = vmatpush2.msra.mxu0 0.0
    %983 = vmatprep.subr.mxu0 0.0
    %984 = vmatpush2.msra.mxu0 0.0
    %985 = vmatprep.subr.mxu0 0.0
    %986 = vmatpush2.msra.mxu0 0.0
    %987 = vmatprep.subr.mxu0 0.0
    %988 = vmatpush2.msra.mxu0 0.0
    %989 = vmatprep.subr.mxu0 0.0
    %990 = vmatpush2.msra.mxu0 0.0
    %991 = vmatprep.subr.mxu0 0.0
    %992 = vmatpush2.msra.mxu0 0.0
    %993 = vmatprep.subr.mxu0 0.0
    %994 = vmatpush2.msra.mxu0 0.0
    %995 = vmatprep.subr.mxu0 0.0
    %996 = vmatpush2.msra.mxu0 0.0
    %997 = vmatprep.subr.mxu0 0.0
    %998 = vmatpush2.msra.mxu0 0.0
    %999 = vmatprep.subr.mxu0 0.0
    %1000 = vmatpush2.msra.mxu0 0.0
    %1001 = vmatprep.subr.mxu0 0.0
    %1002 = vmatpush2.msra.mxu0 0.0
    %1003 = vmatprep.subr.mxu0 0.0
    %1004 = vmatpush2.msra.mxu0 0.0
    %1005 = vmatprep.subr.mxu0 0.0
    %1006 = vmatpush2.msra.mxu0 0.0
    %1007 = vmatprep.subr.mxu0 0.0
    %1008 = vmatpush2.msra.mxu0 0.0
    %1009 = vmatprep.subr.mxu0 0.0
    %1010 = vmatpush2.msra.mxu0 0.0
    %1011 = vmatprep.subr.mxu0 0.0
    %1012 = vmatpush2.msra.mxu0 0.0
    %1013 = vmatprep.mubr.f32.mxu0 0.0
    %v1014 = vand.u32 %v674, 4294901760
    %v1015 = vsub.f32 %v674, %v1014
    %1016 = vmatmul.mubr.f32.gmra.mxu0 %v1015
    %v1017 = vpop.f32.mrf.mxu0
    %v1018 = vadd.f32 %v914, %v1017
    %v1019 = vpop.f32.mrf.mxu0
    %1020 = vdwg.mxu0
    %1021 = vmatprep.subr.mxu0 0.0
    %v1022 = vand.u32 %v31, 4294901760
    %1023 = vmatpush1.msra.mxu0 %v1022
    %1024 = vmatprep.subr.mxu0 0.0
    %v1025 = vand.u32 %v30, 4294901760
    %1026 = vmatpush1.msra.mxu0 %v1025
    %1027 = vmatprep.subr.mxu0 0.0
    %v1028 = vand.u32 %v29, 4294901760
    %1029 = vmatpush1.msra.mxu0 %v1028
    %1030 = vmatprep.subr.mxu0 0.0
    %v1031 = vand.u32 %v28, 4294901760
    %1032 = vmatpush1.msra.mxu0 %v1031
    %1033 = vmatprep.subr.mxu0 0.0
    %v1034 = vand.u32 %v27, 4294901760
    %1035 = vmatpush1.msra.mxu0 %v1034
    %1036 = vmatprep.subr.mxu0 0.0
    %v1037 = vand.u32 %v26, 4294901760
    %1038 = vmatpush1.msra.mxu0 %v1037
    %1039 = vmatprep.subr.mxu0 0.0
    %v1040 = vand.u32 %v25, 4294901760
    %1041 = vmatpush1.msra.mxu0 %v1040
    %1042 = vmatprep.subr.mxu0 0.0
    %v1043 = vand.u32 %v24, 4294901760
    %1044 = vmatpush1.msra.mxu0 %v1043
    %1045 = vmatprep.subr.mxu0 0.0
    %v1046 = vand.u32 %v23, 4294901760
    %1047 = vmatpush1.msra.mxu0 %v1046
    %1048 = vmatprep.subr.mxu0 0.0
    %v1049 = vand.u32 %v22, 4294901760
    %1050 = vmatpush1.msra.mxu0 %v1049
    %1051 = vmatprep.subr.mxu0 0.0
    %v1052 = vand.u32 %v21, 4294901760
    %1053 = vmatpush1.msra.mxu0 %v1052
    %1054 = vmatprep.subr.mxu0 0.0
    %v1055 = vand.u32 %v20, 4294901760
    %1056 = vmatpush1.msra.mxu0 %v1055
    %1057 = vmatprep.subr.mxu0 0.0
    %v1058 = vand.u32 %v19, 4294901760
    %1059 = vmatpush1.msra.mxu0 %v1058
    %1060 = vmatprep.subr.mxu0 0.0
    %v1061 = vand.u32 %v18, 4294901760
    %1062 = vmatpush1.msra.mxu0 %v1061
    %1063 = vmatprep.subr.mxu0 0.0
    %v1064 = vand.u32 %v17, 4294901760
    %1065 = vmatpush1.msra.mxu0 %v1064
    %1066 = vmatprep.subr.mxu0 0.0
    %v1067 = vand.u32 %v16, 4294901760
    %1068 = vmatpush1.msra.mxu0 %v1067
    %1069 = vmatprep.subr.mxu0 0.0
    %1070 = vmatpush2.msra.mxu0 0.0
    %1071 = vmatprep.subr.mxu0 0.0
    %1072 = vmatpush2.msra.mxu0 0.0
    %1073 = vmatprep.subr.mxu0 0.0
    %1074 = vmatpush2.msra.mxu0 0.0
    %1075 = vmatprep.subr.mxu0 0.0
    %1076 = vmatpush2.msra.mxu0 0.0
    %1077 = vmatprep.subr.mxu0 0.0
    %1078 = vmatpush2.msra.mxu0 0.0
    %1079 = vmatprep.subr.mxu0 0.0
    %1080 = vmatpush2.msra.mxu0 0.0
    %1081 = vmatprep.subr.mxu0 0.0
    %1082 = vmatpush2.msra.mxu0 0.0
    %1083 = vmatprep.subr.mxu0 0.0
    %1084 = vmatpush2.msra.mxu0 0.0
    %1085 = vmatprep.subr.mxu0 0.0
    %1086 = vmatpush2.msra.mxu0 0.0
    %1087 = vmatprep.subr.mxu0 0.0
    %1088 = vmatpush2.msra.mxu0 0.0
    %1089 = vmatprep.subr.mxu0 0.0
    %1090 = vmatpush2.msra.mxu0 0.0
    %1091 = vmatprep.subr.mxu0 0.0
    %1092 = vmatpush2.msra.mxu0 0.0
    %1093 = vmatprep.subr.mxu0 0.0
    %1094 = vmatpush2.msra.mxu0 0.0
    %1095 = vmatprep.subr.mxu0 0.0
    %1096 = vmatpush2.msra.mxu0 0.0
    %1097 = vmatprep.subr.mxu0 0.0
    %1098 = vmatpush2.msra.mxu0 0.0
    %1099 = vmatprep.subr.mxu0 0.0
    %1100 = vmatpush2.msra.mxu0 0.0
    %1101 = vmatprep.mubr.f32.mxu0 0.0
    %v1102 = vand.u32 %v674, 4294901760
    %v1103 = vsub.f32 %v674, %v1102
    %v1104 = vand.u32 %v1103, 4294901760
    %1105 = vmatmul.mubr.f32.gmra.mxu0 %v1104
    %v1106 = vpop.f32.mrf.mxu0
    %v1107 = vadd.f32 %v1018, %v1106
    %v1108 = vpop.f32.mrf.mxu0
    %1109 = vdwg.mxu0
    %1110 = vmatprep.subr.mxu0 0.0
    %v1111 = vand.u32 %v31, 4294901760
    %v1112 = vsub.f32 %v31, %v1111
    %v1113 = vand.u32 %v1112, 4294901760
    %1114 = vmatpush1.msra.mxu0 %v1113
    %1115 = vmatprep.subr.mxu0 0.0
    %v1116 = vand.u32 %v30, 4294901760
    %v1117 = vsub.f32 %v30, %v1116
    %v1118 = vand.u32 %v1117, 4294901760
    %1119 = vmatpush1.msra.mxu0 %v1118
    %1120 = vmatprep.subr.mxu0 0.0
    %v1121 = vand.u32 %v29, 4294901760
    %v1122 = vsub.f32 %v29, %v1121
    %v1123 = vand.u32 %v1122, 4294901760
    %1124 = vmatpush1.msra.mxu0 %v1123
    %1125 = vmatprep.subr.mxu0 0.0
    %v1126 = vand.u32 %v28, 4294901760
    %v1127 = vsub.f32 %v28, %v1126
    %v1128 = vand.u32 %v1127, 4294901760
    %1129 = vmatpush1.msra.mxu0 %v1128
    %1130 = vmatprep.subr.mxu0 0.0
    %v1131 = vand.u32 %v27, 4294901760
    %v1132 = vsub.f32 %v27, %v1131
    %v1133 = vand.u32 %v1132, 4294901760
    %1134 = vmatpush1.msra.mxu0 %v1133
    %1135 = vmatprep.subr.mxu0 0.0
    %v1136 = vand.u32 %v26, 4294901760
    %v1137 = vsub.f32 %v26, %v1136
    %v1138 = vand.u32 %v1137, 4294901760
    %1139 = vmatpush1.msra.mxu0 %v1138
    %1140 = vmatprep.subr.mxu0 0.0
    %v1141 = vand.u32 %v25, 4294901760
    %v1142 = vsub.f32 %v25, %v1141
    %v1143 = vand.u32 %v1142, 4294901760
    %1144 = vmatpush1.msra.mxu0 %v1143
    %1145 = vmatprep.subr.mxu0 0.0
    %v1146 = vand.u32 %v24, 4294901760
    %v1147 = vsub.f32 %v24, %v1146
    %v1148 = vand.u32 %v1147, 4294901760
    %1149 = vmatpush1.msra.mxu0 %v1148
    %1150 = vmatprep.subr.mxu0 0.0
    %v1151 = vand.u32 %v23, 4294901760
    %v1152 = vsub.f32 %v23, %v1151
    %v1153 = vand.u32 %v1152, 4294901760
    %1154 = vmatpush1.msra.mxu0 %v1153
    %1155 = vmatprep.subr.mxu0 0.0
    %v1156 = vand.u32 %v22, 4294901760
    %v1157 = vsub.f32 %v22, %v1156
    %v1158 = vand.u32 %v1157, 4294901760
    %1159 = vmatpush1.msra.mxu0 %v1158
    %1160 = vmatprep.subr.mxu0 0.0
    %v1161 = vand.u32 %v21, 4294901760
    %v1162 = vsub.f32 %v21, %v1161
    %v1163 = vand.u32 %v1162, 4294901760
    %1164 = vmatpush1.msra.mxu0 %v1163
    %1165 = vmatprep.subr.mxu0 0.0
    %v1166 = vand.u32 %v20, 4294901760
    %v1167 = vsub.f32 %v20, %v1166
    %v1168 = vand.u32 %v1167, 4294901760
    %1169 = vmatpush1.msra.mxu0 %v1168
    %1170 = vmatprep.subr.mxu0 0.0
    %v1171 = vand.u32 %v19, 4294901760
    %v1172 = vsub.f32 %v19, %v1171
    %v1173 = vand.u32 %v1172, 4294901760
    %1174 = vmatpush1.msra.mxu0 %v1173
    %1175 = vmatprep.subr.mxu0 0.0
    %v1176 = vand.u32 %v18, 4294901760
    %v1177 = vsub.f32 %v18, %v1176
    %v1178 = vand.u32 %v1177, 4294901760
    %1179 = vmatpush1.msra.mxu0 %v1178
    %1180 = vmatprep.subr.mxu0 0.0
    %v1181 = vand.u32 %v17, 4294901760
    %v1182 = vsub.f32 %v17, %v1181
    %v1183 = vand.u32 %v1182, 4294901760
    %1184 = vmatpush1.msra.mxu0 %v1183
    %1185 = vmatprep.subr.mxu0 0.0
    %v1186 = vand.u32 %v16, 4294901760
    %v1187 = vsub.f32 %v16, %v1186
    %v1188 = vand.u32 %v1187, 4294901760
    %1189 = vmatpush1.msra.mxu0 %v1188
    %1190 = vmatprep.subr.mxu0 0.0
    %1191 = vmatpush2.msra.mxu0 0.0
    %1192 = vmatprep.subr.mxu0 0.0
    %1193 = vmatpush2.msra.mxu0 0.0
    %1194 = vmatprep.subr.mxu0 0.0
    %1195 = vmatpush2.msra.mxu0 0.0
    %1196 = vmatprep.subr.mxu0 0.0
    %1197 = vmatpush2.msra.mxu0 0.0
    %1198 = vmatprep.subr.mxu0 0.0
    %1199 = vmatpush2.msra.mxu0 0.0
    %1200 = vmatprep.subr.mxu0 0.0
    %1201 = vmatpush2.msra.mxu0 0.0
    %1202 = vmatprep.subr.mxu0 0.0
    %1203 = vmatpush2.msra.mxu0 0.0
    %1204 = vmatprep.subr.mxu0 0.0
    %1205 = vmatpush2.msra.mxu0 0.0
    %1206 = vmatprep.subr.mxu0 0.0
    %1207 = vmatpush2.msra.mxu0 0.0
    %1208 = vmatprep.subr.mxu0 0.0
    %1209 = vmatpush2.msra.mxu0 0.0
    %1210 = vmatprep.subr.mxu0 0.0
    %1211 = vmatpush2.msra.mxu0 0.0
    %1212 = vmatprep.subr.mxu0 0.0
    %1213 = vmatpush2.msra.mxu0 0.0
    %1214 = vmatprep.subr.mxu0 0.0
    %1215 = vmatpush2.msra.mxu0 0.0
    %1216 = vmatprep.subr.mxu0 0.0
    %1217 = vmatpush2.msra.mxu0 0.0
    %1218 = vmatprep.subr.mxu0 0.0
    %1219 = vmatpush2.msra.mxu0 0.0
    %1220 = vmatprep.subr.mxu0 0.0
    %1221 = vmatpush2.msra.mxu0 0.0
    %1222 = vmatprep.mubr.f32.mxu0 0.0
    %v1223 = vand.u32 %v674, 4294901760
    %1224 = vmatmul.mubr.f32.gmra.mxu0 %v1223
    %v1225 = vpop.f32.mrf.mxu0
    %v1226 = vadd.f32 %v1107, %v1225
    %v1227 = vpop.f32.mrf.mxu0
    %1228 = vdwg.mxu0
    %1229 = vmatprep.subr.mxu0 0.0
    %v1230 = vand.u32 %v31, 4294901760
    %1231 = vmatpush1.msra.mxu0 %v1230
    %1232 = vmatprep.subr.mxu0 0.0
    %v1233 = vand.u32 %v30, 4294901760
    %1234 = vmatpush1.msra.mxu0 %v1233
    %1235 = vmatprep.subr.mxu0 0.0
    %v1236 = vand.u32 %v29, 4294901760
    %1237 = vmatpush1.msra.mxu0 %v1236
    %1238 = vmatprep.subr.mxu0 0.0
    %v1239 = vand.u32 %v28, 4294901760
    %1240 = vmatpush1.msra.mxu0 %v1239
    %1241 = vmatprep.subr.mxu0 0.0
    %v1242 = vand.u32 %v27, 4294901760
    %1243 = vmatpush1.msra.mxu0 %v1242
    %1244 = vmatprep.subr.mxu0 0.0
    %v1245 = vand.u32 %v26, 4294901760
    %1246 = vmatpush1.msra.mxu0 %v1245
    %1247 = vmatprep.subr.mxu0 0.0
    %v1248 = vand.u32 %v25, 4294901760
    %1249 = vmatpush1.msra.mxu0 %v1248
    %1250 = vmatprep.subr.mxu0 0.0
    %v1251 = vand.u32 %v24, 4294901760
    %1252 = vmatpush1.msra.mxu0 %v1251
    %1253 = vmatprep.subr.mxu0 0.0
    %v1254 = vand.u32 %v23, 4294901760
    %1255 = vmatpush1.msra.mxu0 %v1254
    %1256 = vmatprep.subr.mxu0 0.0
    %v1257 = vand.u32 %v22, 4294901760
    %1258 = vmatpush1.msra.mxu0 %v1257
    %1259 = vmatprep.subr.mxu0 0.0
    %v1260 = vand.u32 %v21, 4294901760
    %1261 = vmatpush1.msra.mxu0 %v1260
    %1262 = vmatprep.subr.mxu0 0.0
    %v1263 = vand.u32 %v20, 4294901760
    %1264 = vmatpush1.msra.mxu0 %v1263
    %1265 = vmatprep.subr.mxu0 0.0
    %v1266 = vand.u32 %v19, 4294901760
    %1267 = vmatpush1.msra.mxu0 %v1266
    %1268 = vmatprep.subr.mxu0 0.0
    %v1269 = vand.u32 %v18, 4294901760
    %1270 = vmatpush1.msra.mxu0 %v1269
    %1271 = vmatprep.subr.mxu0 0.0
    %v1272 = vand.u32 %v17, 4294901760
    %1273 = vmatpush1.msra.mxu0 %v1272
    %1274 = vmatprep.subr.mxu0 0.0
    %v1275 = vand.u32 %v16, 4294901760
    %1276 = vmatpush1.msra.mxu0 %v1275
    %1277 = vmatprep.subr.mxu0 0.0
    %1278 = vmatpush2.msra.mxu0 0.0
    %1279 = vmatprep.subr.mxu0 0.0
    %1280 = vmatpush2.msra.mxu0 0.0
    %1281 = vmatprep.subr.mxu0 0.0
    %1282 = vmatpush2.msra.mxu0 0.0
    %1283 = vmatprep.subr.mxu0 0.0
    %1284 = vmatpush2.msra.mxu0 0.0
    %1285 = vmatprep.subr.mxu0 0.0
    %1286 = vmatpush2.msra.mxu0 0.0
    %1287 = vmatprep.subr.mxu0 0.0
    %1288 = vmatpush2.msra.mxu0 0.0
    %1289 = vmatprep.subr.mxu0 0.0
    %1290 = vmatpush2.msra.mxu0 0.0
    %1291 = vmatprep.subr.mxu0 0.0
    %1292 = vmatpush2.msra.mxu0 0.0
    %1293 = vmatprep.subr.mxu0 0.0
    %1294 = vmatpush2.msra.mxu0 0.0
    %1295 = vmatprep.subr.mxu0 0.0
    %1296 = vmatpush2.msra.mxu0 0.0
    %1297 = vmatprep.subr.mxu0 0.0
    %1298 = vmatpush2.msra.mxu0 0.0
    %1299 = vmatprep.subr.mxu0 0.0
    %1300 = vmatpush2.msra.mxu0 0.0
    %1301 = vmatprep.subr.mxu0 0.0
    %1302 = vmatpush2.msra.mxu0 0.0
    %1303 = vmatprep.subr.mxu0 0.0
    %1304 = vmatpush2.msra.mxu0 0.0
    %1305 = vmatprep.subr.mxu0 0.0
    %1306 = vmatpush2.msra.mxu0 0.0
    %1307 = vmatprep.subr.mxu0 0.0
    %1308 = vmatpush2.msra.mxu0 0.0
    %1309 = vmatprep.mubr.f32.mxu0 0.0
    %v1310 = vand.u32 %v674, 4294901760
    %1311 = vmatmul.mubr.f32.gmra.mxu0 %v1310
    %v1312 = vpop.f32.mrf.mxu0
    %v1313 = vadd.f32 %v1226, %v1312
    %v1314 = vpop.f32.mrf.mxu0
    %1315 = vdwg.mxu0
    %v1316 = vmul.f32 %v671, 0.03125
    %v1317 = vmul.f32 %v671, %v1316
    %v1318 = vsub.f32 %v1313, %v1317
    %v1319 = vmul.f32 %v1318, 0.032258064
    %v1320 = vmax.f32 %v1319, 0.0
    %v1321 = vrsqrt.pop %v1320
    %v1322 = vmul.f32 %v1320, %v1321
    %vm1323 = vcmp.eq.f32.partialorder %v1320, inf
    %v1324 = vsel %vm1323, %v1320, %v1322
    %vm1325 = vcmp.eq.f32.partialorder %v1320, 0.0
    %v1326 = vand.u32 %v1320, 2147483648
    %v1327 = vsel %vm1325, %v1326, %v1324
    %v1328 = vadd.f32 %v1327, 1e-06
    %v1329 = vrcp.pop %v1328
    %vm1330 = vcmask 31744
    %v1332 = vsel %vm1330, %v1316, 0
    %vm1334 = vcmask 1043456
    %v1336 = vsel %vm1334, %v32, 0
    %1338 = vmatprep.subr.mxu0 0.0
    %1339 = vmatpush1.msra.mxu0 0.0
    %1340 = vmatprep.subr.mxu0 0.0
    %1341 = vmatpush1.msra.mxu0 0.0
    %1342 = vmatprep.subr.mxu0 0.0
    %1343 = vmatpush1.msra.mxu0 0.0
    %1344 = vmatprep.subr.mxu0 0.0
    %1345 = vmatpush1.msra.mxu0 0.0
    %1346 = vmatprep.subr.mxu0 0.0
    %1347 = vmatpush1.msra.mxu0 0.0
    %1348 = vmatprep.subr.mxu0 0.0
    %1349 = vmatpush1.msra.mxu0 0.0
    %1350 = vmatprep.subr.mxu0 0.0
    %1351 = vmatpush1.msra.mxu0 0.0
    %1352 = vmatprep.subr.mxu0 0.0
    %1353 = vmatpush1.msra.mxu0 0.0
    %1354 = vmatprep.subr.mxu0 0.0
    %1355 = vmatpush1.msra.mxu0 0.0
    %1356 = vmatprep.subr.mxu0 0.0
    %1357 = vmatpush1.msra.mxu0 0.0
    %1358 = vmatprep.subr.mxu0 0.0
    %1359 = vmatpush1.msra.mxu0 0.0
    %1360 = vmatprep.subr.mxu0 0.0
    %1361 = vmatpush1.msra.mxu0 0.0
    %1362 = vmatprep.subr.mxu0 0.0
    %1363 = vmatpush1.msra.mxu0 0.0
    %1364 = vmatprep.subr.mxu0 0.0
    %1365 = vmatpush1.msra.mxu0 0.0
    %1366 = vmatprep.subr.mxu0 0.0
    %1367 = vmatpush1.msra.mxu0 0.0
    %1368 = vmatprep.subr.mxu0 0.0
    %v1369 = vand.u32 %v1336, 4294901760
    %1370 = vmatpush1.msra.mxu0 %v1369
    %1371 = vmatprep.subr.mxu0 0.0
    %1372 = vmatpush2.msra.mxu0 0.0
    %1373 = vmatprep.subr.mxu0 0.0
    %1374 = vmatpush2.msra.mxu0 0.0
    %1375 = vmatprep.subr.mxu0 0.0
    %1376 = vmatpush2.msra.mxu0 0.0
    %1377 = vmatprep.subr.mxu0 0.0
    %1378 = vmatpush2.msra.mxu0 0.0
    %1379 = vmatprep.subr.mxu0 0.0
    %1380 = vmatpush2.msra.mxu0 0.0
    %1381 = vmatprep.subr.mxu0 0.0
    %1382 = vmatpush2.msra.mxu0 0.0
    %1383 = vmatprep.subr.mxu0 0.0
    %1384 = vmatpush2.msra.mxu0 0.0
    %1385 = vmatprep.subr.mxu0 0.0
    %1386 = vmatpush2.msra.mxu0 0.0
    %1387 = vmatprep.subr.mxu0 0.0
    %1388 = vmatpush2.msra.mxu0 0.0
    %1389 = vmatprep.subr.mxu0 0.0
    %1390 = vmatpush2.msra.mxu0 0.0
    %1391 = vmatprep.subr.mxu0 0.0
    %1392 = vmatpush2.msra.mxu0 0.0
    %1393 = vmatprep.subr.mxu0 0.0
    %1394 = vmatpush2.msra.mxu0 0.0
    %1395 = vmatprep.subr.mxu0 0.0
    %1396 = vmatpush2.msra.mxu0 0.0
    %1397 = vmatprep.subr.mxu0 0.0
    %1398 = vmatpush2.msra.mxu0 0.0
    %1399 = vmatprep.subr.mxu0 0.0
    %1400 = vmatpush2.msra.mxu0 0.0
    %1401 = vmatprep.subr.mxu0 0.0
    %1402 = vmatpush2.msra.mxu0 0.0
    %1403 = vmatprep.mubr.f32.mxu0 0.0
    %v1404 = vand.u32 %v1332, 4294901760
    %v1405 = vsub.f32 %v1332, %v1404
    %v1406 = vand.u32 %v1405, 4294901760
    %v1407 = vsub.f32 %v1405, %v1406
    %v1408 = vand.u32 %v1407, 4294901760
    %1409 = vmatmul.mubr.f32.gmra.mxu0 %v1408
    %v1410 = vpop.f32.mrf.mxu0
    %v1411 = vadd.f32 0.0, %v1410
    %v1412 = vpop.f32.mrf.mxu0
    %1413 = vdwg.mxu0
    %1414 = vmatprep.subr.mxu0 0.0
    %1415 = vmatpush1.msra.mxu0 0.0
    %1416 = vmatprep.subr.mxu0 0.0
    %1417 = vmatpush1.msra.mxu0 0.0
    %1418 = vmatprep.subr.mxu0 0.0
    %1419 = vmatpush1.msra.mxu0 0.0
    %1420 = vmatprep.subr.mxu0 0.0
    %1421 = vmatpush1.msra.mxu0 0.0
    %1422 = vmatprep.subr.mxu0 0.0
    %1423 = vmatpush1.msra.mxu0 0.0
    %1424 = vmatprep.subr.mxu0 0.0
    %1425 = vmatpush1.msra.mxu0 0.0
    %1426 = vmatprep.subr.mxu0 0.0
    %1427 = vmatpush1.msra.mxu0 0.0
    %1428 = vmatprep.subr.mxu0 0.0
    %1429 = vmatpush1.msra.mxu0 0.0
    %1430 = vmatprep.subr.mxu0 0.0
    %1431 = vmatpush1.msra.mxu0 0.0
    %1432 = vmatprep.subr.mxu0 0.0
    %1433 = vmatpush1.msra.mxu0 0.0
    %1434 = vmatprep.subr.mxu0 0.0
    %1435 = vmatpush1.msra.mxu0 0.0
    %1436 = vmatprep.subr.mxu0 0.0
    %1437 = vmatpush1.msra.mxu0 0.0
    %1438 = vmatprep.subr.mxu0 0.0
    %1439 = vmatpush1.msra.mxu0 0.0
    %1440 = vmatprep.subr.mxu0 0.0
    %1441 = vmatpush1.msra.mxu0 0.0
    %1442 = vmatprep.subr.mxu0 0.0
    %1443 = vmatpush1.msra.mxu0 0.0
    %1444 = vmatprep.subr.mxu0 0.0
    %v1445 = vand.u32 %v1336, 4294901760
    %v1446 = vsub.f32 %v1336, %v1445
    %v1447 = vand.u32 %v1446, 4294901760
    %v1448 = vsub.f32 %v1446, %v1447
    %v1449 = vand.u32 %v1448, 4294901760
    %1450 = vmatpush1.msra.mxu0 %v1449
    %1451 = vmatprep.subr.mxu0 0.0
    %1452 = vmatpush2.msra.mxu0 0.0
    %1453 = vmatprep.subr.mxu0 0.0
    %1454 = vmatpush2.msra.mxu0 0.0
    %1455 = vmatprep.subr.mxu0 0.0
    %1456 = vmatpush2.msra.mxu0 0.0
    %1457 = vmatprep.subr.mxu0 0.0
    %1458 = vmatpush2.msra.mxu0 0.0
    %1459 = vmatprep.subr.mxu0 0.0
    %1460 = vmatpush2.msra.mxu0 0.0
    %1461 = vmatprep.subr.mxu0 0.0
    %1462 = vmatpush2.msra.mxu0 0.0
    %1463 = vmatprep.subr.mxu0 0.0
    %1464 = vmatpush2.msra.mxu0 0.0
    %1465 = vmatprep.subr.mxu0 0.0
    %1466 = vmatpush2.msra.mxu0 0.0
    %1467 = vmatprep.subr.mxu0 0.0
    %1468 = vmatpush2.msra.mxu0 0.0
    %1469 = vmatprep.subr.mxu0 0.0
    %1470 = vmatpush2.msra.mxu0 0.0
    %1471 = vmatprep.subr.mxu0 0.0
    %1472 = vmatpush2.msra.mxu0 0.0
    %1473 = vmatprep.subr.mxu0 0.0
    %1474 = vmatpush2.msra.mxu0 0.0
    %1475 = vmatprep.subr.mxu0 0.0
    %1476 = vmatpush2.msra.mxu0 0.0
    %1477 = vmatprep.subr.mxu0 0.0
    %1478 = vmatpush2.msra.mxu0 0.0
    %1479 = vmatprep.subr.mxu0 0.0
    %1480 = vmatpush2.msra.mxu0 0.0
    %1481 = vmatprep.subr.mxu0 0.0
    %1482 = vmatpush2.msra.mxu0 0.0
    %1483 = vmatprep.mubr.f32.mxu0 0.0
    %v1484 = vand.u32 %v1332, 4294901760
    %1485 = vmatmul.mubr.f32.gmra.mxu0 %v1484
    %v1486 = vpop.f32.mrf.mxu0
    %v1487 = vadd.f32 %v1411, %v1486
    %v1488 = vpop.f32.mrf.mxu0
    %1489 = vdwg.mxu0
    %1490 = vmatprep.subr.mxu0 0.0
    %1491 = vmatpush1.msra.mxu0 0.0
    %1492 = vmatprep.subr.mxu0 0.0
    %1493 = vmatpush1.msra.mxu0 0.0
    %1494 = vmatprep.subr.mxu0 0.0
    %1495 = vmatpush1.msra.mxu0 0.0
    %1496 = vmatprep.subr.mxu0 0.0
    %1497 = vmatpush1.msra.mxu0 0.0
    %1498 = vmatprep.subr.mxu0 0.0
    %1499 = vmatpush1.msra.mxu0 0.0
    %1500 = vmatprep.subr.mxu0 0.0
    %1501 = vmatpush1.msra.mxu0 0.0
    %1502 = vmatprep.subr.mxu0 0.0
    %1503 = vmatpush1.msra.mxu0 0.0
    %1504 = vmatprep.subr.mxu0 0.0
    %1505 = vmatpush1.msra.mxu0 0.0
    %1506 = vmatprep.subr.mxu0 0.0
    %1507 = vmatpush1.msra.mxu0 0.0
    %1508 = vmatprep.subr.mxu0 0.0
    %1509 = vmatpush1.msra.mxu0 0.0
    %1510 = vmatprep.subr.mxu0 0.0
    %1511 = vmatpush1.msra.mxu0 0.0
    %1512 = vmatprep.subr.mxu0 0.0
    %1513 = vmatpush1.msra.mxu0 0.0
    %1514 = vmatprep.subr.mxu0 0.0
    %1515 = vmatpush1.msra.mxu0 0.0
    %1516 = vmatprep.subr.mxu0 0.0
    %1517 = vmatpush1.msra.mxu0 0.0
    %1518 = vmatprep.subr.mxu0 0.0
    %1519 = vmatpush1.msra.mxu0 0.0
    %1520 = vmatprep.subr.mxu0 0.0
    %v1521 = vand.u32 %v1336, 4294901760
    %v1522 = vsub.f32 %v1336, %v1521
    %1523 = vmatpush1.msra.mxu0 %v1522
    %1524 = vmatprep.subr.mxu0 0.0
    %1525 = vmatpush2.msra.mxu0 0.0
    %1526 = vmatprep.subr.mxu0 0.0
    %1527 = vmatpush2.msra.mxu0 0.0
    %1528 = vmatprep.subr.mxu0 0.0
    %1529 = vmatpush2.msra.mxu0 0.0
    %1530 = vmatprep.subr.mxu0 0.0
    %1531 = vmatpush2.msra.mxu0 0.0
    %1532 = vmatprep.subr.mxu0 0.0
    %1533 = vmatpush2.msra.mxu0 0.0
    %1534 = vmatprep.subr.mxu0 0.0
    %1535 = vmatpush2.msra.mxu0 0.0
    %1536 = vmatprep.subr.mxu0 0.0
    %1537 = vmatpush2.msra.mxu0 0.0
    %1538 = vmatprep.subr.mxu0 0.0
    %1539 = vmatpush2.msra.mxu0 0.0
    %1540 = vmatprep.subr.mxu0 0.0
    %1541 = vmatpush2.msra.mxu0 0.0
    %1542 = vmatprep.subr.mxu0 0.0
    %1543 = vmatpush2.msra.mxu0 0.0
    %1544 = vmatprep.subr.mxu0 0.0
    %1545 = vmatpush2.msra.mxu0 0.0
    %1546 = vmatprep.subr.mxu0 0.0
    %1547 = vmatpush2.msra.mxu0 0.0
    %1548 = vmatprep.subr.mxu0 0.0
    %1549 = vmatpush2.msra.mxu0 0.0
    %1550 = vmatprep.subr.mxu0 0.0
    %1551 = vmatpush2.msra.mxu0 0.0
    %1552 = vmatprep.subr.mxu0 0.0
    %1553 = vmatpush2.msra.mxu0 0.0
    %1554 = vmatprep.subr.mxu0 0.0
    %1555 = vmatpush2.msra.mxu0 0.0
    %1556 = vmatprep.mubr.f32.mxu0 0.0
    %v1557 = vand.u32 %v1332, 4294901760
    %v1558 = vsub.f32 %v1332, %v1557
    %1559 = vmatmul.mubr.f32.gmra.mxu0 %v1558
    %v1560 = vpop.f32.mrf.mxu0
    %v1561 = vadd.f32 %v1487, %v1560
    %v1562 = vpop.f32.mrf.mxu0
    %1563 = vdwg.mxu0
    %1564 = vmatprep.subr.mxu0 0.0
    %1565 = vmatpush1.msra.mxu0 0.0
    %1566 = vmatprep.subr.mxu0 0.0
    %1567 = vmatpush1.msra.mxu0 0.0
    %1568 = vmatprep.subr.mxu0 0.0
    %1569 = vmatpush1.msra.mxu0 0.0
    %1570 = vmatprep.subr.mxu0 0.0
    %1571 = vmatpush1.msra.mxu0 0.0
    %1572 = vmatprep.subr.mxu0 0.0
    %1573 = vmatpush1.msra.mxu0 0.0
    %1574 = vmatprep.subr.mxu0 0.0
    %1575 = vmatpush1.msra.mxu0 0.0
    %1576 = vmatprep.subr.mxu0 0.0
    %1577 = vmatpush1.msra.mxu0 0.0
    %1578 = vmatprep.subr.mxu0 0.0
    %1579 = vmatpush1.msra.mxu0 0.0
    %1580 = vmatprep.subr.mxu0 0.0
    %1581 = vmatpush1.msra.mxu0 0.0
    %1582 = vmatprep.subr.mxu0 0.0
    %1583 = vmatpush1.msra.mxu0 0.0
    %1584 = vmatprep.subr.mxu0 0.0
    %1585 = vmatpush1.msra.mxu0 0.0
    %1586 = vmatprep.subr.mxu0 0.0
    %1587 = vmatpush1.msra.mxu0 0.0
    %1588 = vmatprep.subr.mxu0 0.0
    %1589 = vmatpush1.msra.mxu0 0.0
    %1590 = vmatprep.subr.mxu0 0.0
    %1591 = vmatpush1.msra.mxu0 0.0
    %1592 = vmatprep.subr.mxu0 0.0
    %1593 = vmatpush1.msra.mxu0 0.0
    %1594 = vmatprep.subr.mxu0 0.0
    %v1595 = vand.u32 %v1336, 4294901760
    %1596 = vmatpush1.msra.mxu0 %v1595
    %1597 = vmatprep.subr.mxu0 0.0
    %1598 = vmatpush2.msra.mxu0 0.0
    %1599 = vmatprep.subr.mxu0 0.0
    %1600 = vmatpush2.msra.mxu0 0.0
    %1601 = vmatprep.subr.mxu0 0.0
    %1602 = vmatpush2.msra.mxu0 0.0
    %1603 = vmatprep.subr.mxu0 0.0
    %1604 = vmatpush2.msra.mxu0 0.0
    %1605 = vmatprep.subr.mxu0 0.0
    %1606 = vmatpush2.msra.mxu0 0.0
    %1607 = vmatprep.subr.mxu0 0.0
    %1608 = vmatpush2.msra.mxu0 0.0
    %1609 = vmatprep.subr.mxu0 0.0
    %1610 = vmatpush2.msra.mxu0 0.0
    %1611 = vmatprep.subr.mxu0 0.0
    %1612 = vmatpush2.msra.mxu0 0.0
    %1613 = vmatprep.subr.mxu0 0.0
    %1614 = vmatpush2.msra.mxu0 0.0
    %1615 = vmatprep.subr.mxu0 0.0
    %1616 = vmatpush2.msra.mxu0 0.0
    %1617 = vmatprep.subr.mxu0 0.0
    %1618 = vmatpush2.msra.mxu0 0.0
    %1619 = vmatprep.subr.mxu0 0.0
    %1620 = vmatpush2.msra.mxu0 0.0
    %1621 = vmatprep.subr.mxu0 0.0
    %1622 = vmatpush2.msra.mxu0 0.0
    %1623 = vmatprep.subr.mxu0 0.0
    %1624 = vmatpush2.msra.mxu0 0.0
    %1625 = vmatprep.subr.mxu0 0.0
    %1626 = vmatpush2.msra.mxu0 0.0
    %1627 = vmatprep.subr.mxu0 0.0
    %1628 = vmatpush2.msra.mxu0 0.0
    %1629 = vmatprep.mubr.f32.mxu0 0.0
    %v1630 = vand.u32 %v1332, 4294901760
    %v1631 = vsub.f32 %v1332, %v1630
    %v1632 = vand.u32 %v1631, 4294901760
    %1633 = vmatmul.mubr.f32.gmra.mxu0 %v1632
    %v1634 = vpop.f32.mrf.mxu0
    %v1635 = vadd.f32 %v1561, %v1634
    %v1636 = vpop.f32.mrf.mxu0
    %1637 = vdwg.mxu0
    %1638 = vmatprep.subr.mxu0 0.0
    %1639 = vmatpush1.msra.mxu0 0.0
    %1640 = vmatprep.subr.mxu0 0.0
    %1641 = vmatpush1.msra.mxu0 0.0
    %1642 = vmatprep.subr.mxu0 0.0
    %1643 = vmatpush1.msra.mxu0 0.0
    %1644 = vmatprep.subr.mxu0 0.0
    %1645 = vmatpush1.msra.mxu0 0.0
    %1646 = vmatprep.subr.mxu0 0.0
    %1647 = vmatpush1.msra.mxu0 0.0
    %1648 = vmatprep.subr.mxu0 0.0
    %1649 = vmatpush1.msra.mxu0 0.0
    %1650 = vmatprep.subr.mxu0 0.0
    %1651 = vmatpush1.msra.mxu0 0.0
    %1652 = vmatprep.subr.mxu0 0.0
    %1653 = vmatpush1.msra.mxu0 0.0
    %1654 = vmatprep.subr.mxu0 0.0
    %1655 = vmatpush1.msra.mxu0 0.0
    %1656 = vmatprep.subr.mxu0 0.0
    %1657 = vmatpush1.msra.mxu0 0.0
    %1658 = vmatprep.subr.mxu0 0.0
    %1659 = vmatpush1.msra.mxu0 0.0
    %1660 = vmatprep.subr.mxu0 0.0
    %1661 = vmatpush1.msra.mxu0 0.0
    %1662 = vmatprep.subr.mxu0 0.0
    %1663 = vmatpush1.msra.mxu0 0.0
    %1664 = vmatprep.subr.mxu0 0.0
    %1665 = vmatpush1.msra.mxu0 0.0
    %1666 = vmatprep.subr.mxu0 0.0
    %1667 = vmatpush1.msra.mxu0 0.0
    %1668 = vmatprep.subr.mxu0 0.0
    %v1669 = vand.u32 %v1336, 4294901760
    %v1670 = vsub.f32 %v1336, %v1669
    %v1671 = vand.u32 %v1670, 4294901760
    %1672 = vmatpush1.msra.mxu0 %v1671
    %1673 = vmatprep.subr.mxu0 0.0
    %1674 = vmatpush2.msra.mxu0 0.0
    %1675 = vmatprep.subr.mxu0 0.0
    %1676 = vmatpush2.msra.mxu0 0.0
    %1677 = vmatprep.subr.mxu0 0.0
    %1678 = vmatpush2.msra.mxu0 0.0
    %1679 = vmatprep.subr.mxu0 0.0
    %1680 = vmatpush2.msra.mxu0 0.0
    %1681 = vmatprep.subr.mxu0 0.0
    %1682 = vmatpush2.msra.mxu0 0.0
    %1683 = vmatprep.subr.mxu0 0.0
    %1684 = vmatpush2.msra.mxu0 0.0
    %1685 = vmatprep.subr.mxu0 0.0
    %1686 = vmatpush2.msra.mxu0 0.0
    %1687 = vmatprep.subr.mxu0 0.0
    %1688 = vmatpush2.msra.mxu0 0.0
    %1689 = vmatprep.subr.mxu0 0.0
    %1690 = vmatpush2.msra.mxu0 0.0
    %1691 = vmatprep.subr.mxu0 0.0
    %1692 = vmatpush2.msra.mxu0 0.0
    %1693 = vmatprep.subr.mxu0 0.0
    %1694 = vmatpush2.msra.mxu0 0.0
    %1695 = vmatprep.subr.mxu0 0.0
    %1696 = vmatpush2.msra.mxu0 0.0
    %1697 = vmatprep.subr.mxu0 0.0
    %1698 = vmatpush2.msra.mxu0 0.0
    %1699 = vmatprep.subr.mxu0 0.0
    %1700 = vmatpush2.msra.mxu0 0.0
    %1701 = vmatprep.subr.mxu0 0.0
    %1702 = vmatpush2.msra.mxu0 0.0
    %1703 = vmatprep.subr.mxu0 0.0
    %1704 = vmatpush2.msra.mxu0 0.0
    %1705 = vmatprep.mubr.f32.mxu0 0.0
    %v1706 = vand.u32 %v1332, 4294901760
    %1707 = vmatmul.mubr.f32.gmra.mxu0 %v1706
    %v1708 = vpop.f32.mrf.mxu0
    %v1709 = vadd.f32 %v1635, %v1708
    %v1710 = vpop.f32.mrf.mxu0
    %1711 = vdwg.mxu0
    %1712 = vmatprep.subr.mxu0 0.0
    %1713 = vmatpush1.msra.mxu0 0.0
    %1714 = vmatprep.subr.mxu0 0.0
    %1715 = vmatpush1.msra.mxu0 0.0
    %1716 = vmatprep.subr.mxu0 0.0
    %1717 = vmatpush1.msra.mxu0 0.0
    %1718 = vmatprep.subr.mxu0 0.0
    %1719 = vmatpush1.msra.mxu0 0.0
    %1720 = vmatprep.subr.mxu0 0.0
    %1721 = vmatpush1.msra.mxu0 0.0
    %1722 = vmatprep.subr.mxu0 0.0
    %1723 = vmatpush1.msra.mxu0 0.0
    %1724 = vmatprep.subr.mxu0 0.0
    %1725 = vmatpush1.msra.mxu0 0.0
    %1726 = vmatprep.subr.mxu0 0.0
    %1727 = vmatpush1.msra.mxu0 0.0
    %1728 = vmatprep.subr.mxu0 0.0
    %1729 = vmatpush1.msra.mxu0 0.0
    %1730 = vmatprep.subr.mxu0 0.0
    %1731 = vmatpush1.msra.mxu0 0.0
    %1732 = vmatprep.subr.mxu0 0.0
    %1733 = vmatpush1.msra.mxu0 0.0
    %1734 = vmatprep.subr.mxu0 0.0
    %1735 = vmatpush1.msra.mxu0 0.0
    %1736 = vmatprep.subr.mxu0 0.0
    %1737 = vmatpush1.msra.mxu0 0.0
    %1738 = vmatprep.subr.mxu0 0.0
    %1739 = vmatpush1.msra.mxu0 0.0
    %1740 = vmatprep.subr.mxu0 0.0
    %1741 = vmatpush1.msra.mxu0 0.0
    %1742 = vmatprep.subr.mxu0 0.0
    %v1743 = vand.u32 %v1336, 4294901760
    %1744 = vmatpush1.msra.mxu0 %v1743
    %1745 = vmatprep.subr.mxu0 0.0
    %1746 = vmatpush2.msra.mxu0 0.0
    %1747 = vmatprep.subr.mxu0 0.0
    %1748 = vmatpush2.msra.mxu0 0.0
    %1749 = vmatprep.subr.mxu0 0.0
    %1750 = vmatpush2.msra.mxu0 0.0
    %1751 = vmatprep.subr.mxu0 0.0
    %1752 = vmatpush2.msra.mxu0 0.0
    %1753 = vmatprep.subr.mxu0 0.0
    %1754 = vmatpush2.msra.mxu0 0.0
    %1755 = vmatprep.subr.mxu0 0.0
    %1756 = vmatpush2.msra.mxu0 0.0
    %1757 = vmatprep.subr.mxu0 0.0
    %1758 = vmatpush2.msra.mxu0 0.0
    %1759 = vmatprep.subr.mxu0 0.0
    %1760 = vmatpush2.msra.mxu0 0.0
    %1761 = vmatprep.subr.mxu0 0.0
    %1762 = vmatpush2.msra.mxu0 0.0
    %1763 = vmatprep.subr.mxu0 0.0
    %1764 = vmatpush2.msra.mxu0 0.0
    %1765 = vmatprep.subr.mxu0 0.0
    %1766 = vmatpush2.msra.mxu0 0.0
    %1767 = vmatprep.subr.mxu0 0.0
    %1768 = vmatpush2.msra.mxu0 0.0
    %1769 = vmatprep.subr.mxu0 0.0
    %1770 = vmatpush2.msra.mxu0 0.0
    %1771 = vmatprep.subr.mxu0 0.0
    %1772 = vmatpush2.msra.mxu0 0.0
    %1773 = vmatprep.subr.mxu0 0.0
    %1774 = vmatpush2.msra.mxu0 0.0
    %1775 = vmatprep.subr.mxu0 0.0
    %1776 = vmatpush2.msra.mxu0 0.0
    %1777 = vmatprep.mubr.f32.mxu0 0.0
    %v1778 = vand.u32 %v1332, 4294901760
    %1779 = vmatmul.mubr.f32.gmra.mxu0 %v1778
    %v1780 = vpop.f32.mrf.mxu0
    %v1781 = vadd.f32 %v1709, %v1780
    %v1782 = vpop.f32.mrf.mxu0
    %1783 = vdwg.mxu0
    %v1785 = vsel %vm1330, %v1329, 0
    %1787 = vmatprep.subr.mxu0 0.0
    %1788 = vmatpush1.msra.mxu0 0.0
    %1789 = vmatprep.subr.mxu0 0.0
    %1790 = vmatpush1.msra.mxu0 0.0
    %1791 = vmatprep.subr.mxu0 0.0
    %1792 = vmatpush1.msra.mxu0 0.0
    %1793 = vmatprep.subr.mxu0 0.0
    %1794 = vmatpush1.msra.mxu0 0.0
    %1795 = vmatprep.subr.mxu0 0.0
    %1796 = vmatpush1.msra.mxu0 0.0
    %1797 = vmatprep.subr.mxu0 0.0
    %1798 = vmatpush1.msra.mxu0 0.0
    %1799 = vmatprep.subr.mxu0 0.0
    %1800 = vmatpush1.msra.mxu0 0.0
    %1801 = vmatprep.subr.mxu0 0.0
    %1802 = vmatpush1.msra.mxu0 0.0
    %1803 = vmatprep.subr.mxu0 0.0
    %1804 = vmatpush1.msra.mxu0 0.0
    %1805 = vmatprep.subr.mxu0 0.0
    %1806 = vmatpush1.msra.mxu0 0.0
    %1807 = vmatprep.subr.mxu0 0.0
    %1808 = vmatpush1.msra.mxu0 0.0
    %1809 = vmatprep.subr.mxu0 0.0
    %1810 = vmatpush1.msra.mxu0 0.0
    %1811 = vmatprep.subr.mxu0 0.0
    %1812 = vmatpush1.msra.mxu0 0.0
    %1813 = vmatprep.subr.mxu0 0.0
    %1814 = vmatpush1.msra.mxu0 0.0
    %1815 = vmatprep.subr.mxu0 0.0
    %1816 = vmatpush1.msra.mxu0 0.0
    %1817 = vmatprep.subr.mxu0 0.0
    %v1818 = vand.u32 %v1336, 4294901760
    %1819 = vmatpush1.msra.mxu0 %v1818
    %1820 = vmatprep.subr.mxu0 0.0
    %1821 = vmatpush2.msra.mxu0 0.0
    %1822 = vmatprep.subr.mxu0 0.0
    %1823 = vmatpush2.msra.mxu0 0.0
    %1824 = vmatprep.subr.mxu0 0.0
    %1825 = vmatpush2.msra.mxu0 0.0
    %1826 = vmatprep.subr.mxu0 0.0
    %1827 = vmatpush2.msra.mxu0 0.0
    %1828 = vmatprep.subr.mxu0 0.0
    %1829 = vmatpush2.msra.mxu0 0.0
    %1830 = vmatprep.subr.mxu0 0.0
    %1831 = vmatpush2.msra.mxu0 0.0
    %1832 = vmatprep.subr.mxu0 0.0
    %1833 = vmatpush2.msra.mxu0 0.0
    %1834 = vmatprep.subr.mxu0 0.0
    %1835 = vmatpush2.msra.mxu0 0.0
    %1836 = vmatprep.subr.mxu0 0.0
    %1837 = vmatpush2.msra.mxu0 0.0
    %1838 = vmatprep.subr.mxu0 0.0
    %1839 = vmatpush2.msra.mxu0 0.0
    %1840 = vmatprep.subr.mxu0 0.0
    %1841 = vmatpush2.msra.mxu0 0.0
    %1842 = vmatprep.subr.mxu0 0.0
    %1843 = vmatpush2.msra.mxu0 0.0
    %1844 = vmatprep.subr.mxu0 0.0
    %1845 = vmatpush2.msra.mxu0 0.0
    %1846 = vmatprep.subr.mxu0 0.0
    %1847 = vmatpush2.msra.mxu0 0.0
    %1848 = vmatprep.subr.mxu0 0.0
    %1849 = vmatpush2.msra.mxu0 0.0
    %1850 = vmatprep.subr.mxu0 0.0
    %1851 = vmatpush2.msra.mxu0 0.0
    %1852 = vmatprep.mubr.f32.mxu0 0.0
    %v1853 = vand.u32 %v1785, 4294901760
    %v1854 = vsub.f32 %v1785, %v1853
    %v1855 = vand.u32 %v1854, 4294901760
    %v1856 = vsub.f32 %v1854, %v1855
    %v1857 = vand.u32 %v1856, 4294901760
    %1858 = vmatmul.mubr.f32.gmra.mxu0 %v1857
    %v1859 = vpop.f32.mrf.mxu0
    %v1860 = vadd.f32 0.0, %v1859
    %v1861 = vpop.f32.mrf.mxu0
    %1862 = vdwg.mxu0
    %1863 = vmatprep.subr.mxu0 0.0
    %1864 = vmatpush1.msra.mxu0 0.0
    %1865 = vmatprep.subr.mxu0 0.0
    %1866 = vmatpush1.msra.mxu0 0.0
    %1867 = vmatprep.subr.mxu0 0.0
    %1868 = vmatpush1.msra.mxu0 0.0
    %1869 = vmatprep.subr.mxu0 0.0
    %1870 = vmatpush1.msra.mxu0 0.0
    %1871 = vmatprep.subr.mxu0 0.0
    %1872 = vmatpush1.msra.mxu0 0.0
    %1873 = vmatprep.subr.mxu0 0.0
    %1874 = vmatpush1.msra.mxu0 0.0
    %1875 = vmatprep.subr.mxu0 0.0
    %1876 = vmatpush1.msra.mxu0 0.0
    %1877 = vmatprep.subr.mxu0 0.0
    %1878 = vmatpush1.msra.mxu0 0.0
    %1879 = vmatprep.subr.mxu0 0.0
    %1880 = vmatpush1.msra.mxu0 0.0
    %1881 = vmatprep.subr.mxu0 0.0
    %1882 = vmatpush1.msra.mxu0 0.0
    %1883 = vmatprep.subr.mxu0 0.0
    %1884 = vmatpush1.msra.mxu0 0.0
    %1885 = vmatprep.subr.mxu0 0.0
    %1886 = vmatpush1.msra.mxu0 0.0
    %1887 = vmatprep.subr.mxu0 0.0
    %1888 = vmatpush1.msra.mxu0 0.0
    %1889 = vmatprep.subr.mxu0 0.0
    %1890 = vmatpush1.msra.mxu0 0.0
    %1891 = vmatprep.subr.mxu0 0.0
    %1892 = vmatpush1.msra.mxu0 0.0
    %1893 = vmatprep.subr.mxu0 0.0
    %v1894 = vand.u32 %v1336, 4294901760
    %v1895 = vsub.f32 %v1336, %v1894
    %v1896 = vand.u32 %v1895, 4294901760
    %v1897 = vsub.f32 %v1895, %v1896
    %v1898 = vand.u32 %v1897, 4294901760
    %1899 = vmatpush1.msra.mxu0 %v1898
    %1900 = vmatprep.subr.mxu0 0.0
    %1901 = vmatpush2.msra.mxu0 0.0
    %1902 = vmatprep.subr.mxu0 0.0
    %1903 = vmatpush2.msra.mxu0 0.0
    %1904 = vmatprep.subr.mxu0 0.0
    %1905 = vmatpush2.msra.mxu0 0.0
    %1906 = vmatprep.subr.mxu0 0.0
    %1907 = vmatpush2.msra.mxu0 0.0
    %1908 = vmatprep.subr.mxu0 0.0
    %1909 = vmatpush2.msra.mxu0 0.0
    %1910 = vmatprep.subr.mxu0 0.0
    %1911 = vmatpush2.msra.mxu0 0.0
    %1912 = vmatprep.subr.mxu0 0.0
    %1913 = vmatpush2.msra.mxu0 0.0
    %1914 = vmatprep.subr.mxu0 0.0
    %1915 = vmatpush2.msra.mxu0 0.0
    %1916 = vmatprep.subr.mxu0 0.0
    %1917 = vmatpush2.msra.mxu0 0.0
    %1918 = vmatprep.subr.mxu0 0.0
    %1919 = vmatpush2.msra.mxu0 0.0
    %1920 = vmatprep.subr.mxu0 0.0
    %1921 = vmatpush2.msra.mxu0 0.0
    %1922 = vmatprep.subr.mxu0 0.0
    %1923 = vmatpush2.msra.mxu0 0.0
    %1924 = vmatprep.subr.mxu0 0.0
    %1925 = vmatpush2.msra.mxu0 0.0
    %1926 = vmatprep.subr.mxu0 0.0
    %1927 = vmatpush2.msra.mxu0 0.0
    %1928 = vmatprep.subr.mxu0 0.0
    %1929 = vmatpush2.msra.mxu0 0.0
    %1930 = vmatprep.subr.mxu0 0.0
    %1931 = vmatpush2.msra.mxu0 0.0
    %1932 = vmatprep.mubr.f32.mxu0 0.0
    %v1933 = vand.u32 %v1785, 4294901760
    %1934 = vmatmul.mubr.f32.gmra.mxu0 %v1933
    %v1935 = vpop.f32.mrf.mxu0
    %v1936 = vadd.f32 %v1860, %v1935
    %v1937 = vpop.f32.mrf.mxu0
    %1938 = vdwg.mxu0
    %1939 = vmatprep.subr.mxu0 0.0
    %1940 = vmatpush1.msra.mxu0 0.0
    %1941 = vmatprep.subr.mxu0 0.0
    %1942 = vmatpush1.msra.mxu0 0.0
    %1943 = vmatprep.subr.mxu0 0.0
    %1944 = vmatpush1.msra.mxu0 0.0
    %1945 = vmatprep.subr.mxu0 0.0
    %1946 = vmatpush1.msra.mxu0 0.0
    %1947 = vmatprep.subr.mxu0 0.0
    %1948 = vmatpush1.msra.mxu0 0.0
    %1949 = vmatprep.subr.mxu0 0.0
    %1950 = vmatpush1.msra.mxu0 0.0
    %1951 = vmatprep.subr.mxu0 0.0
    %1952 = vmatpush1.msra.mxu0 0.0
    %1953 = vmatprep.subr.mxu0 0.0
    %1954 = vmatpush1.msra.mxu0 0.0
    %1955 = vmatprep.subr.mxu0 0.0
    %1956 = vmatpush1.msra.mxu0 0.0
    %1957 = vmatprep.subr.mxu0 0.0
    %1958 = vmatpush1.msra.mxu0 0.0
    %1959 = vmatprep.subr.mxu0 0.0
    %1960 = vmatpush1.msra.mxu0 0.0
    %1961 = vmatprep.subr.mxu0 0.0
    %1962 = vmatpush1.msra.mxu0 0.0
    %1963 = vmatprep.subr.mxu0 0.0
    %1964 = vmatpush1.msra.mxu0 0.0
    %1965 = vmatprep.subr.mxu0 0.0
    %1966 = vmatpush1.msra.mxu0 0.0
    %1967 = vmatprep.subr.mxu0 0.0
    %1968 = vmatpush1.msra.mxu0 0.0
    %1969 = vmatprep.subr.mxu0 0.0
    %v1970 = vand.u32 %v1336, 4294901760
    %v1971 = vsub.f32 %v1336, %v1970
    %1972 = vmatpush1.msra.mxu0 %v1971
    %1973 = vmatprep.subr.mxu0 0.0
    %1974 = vmatpush2.msra.mxu0 0.0
    %1975 = vmatprep.subr.mxu0 0.0
    %1976 = vmatpush2.msra.mxu0 0.0
    %1977 = vmatprep.subr.mxu0 0.0
    %1978 = vmatpush2.msra.mxu0 0.0
    %1979 = vmatprep.subr.mxu0 0.0
    %1980 = vmatpush2.msra.mxu0 0.0
    %1981 = vmatprep.subr.mxu0 0.0
    %1982 = vmatpush2.msra.mxu0 0.0
    %1983 = vmatprep.subr.mxu0 0.0
    %1984 = vmatpush2.msra.mxu0 0.0
    %1985 = vmatprep.subr.mxu0 0.0
    %1986 = vmatpush2.msra.mxu0 0.0
    %1987 = vmatprep.subr.mxu0 0.0
    %1988 = vmatpush2.msra.mxu0 0.0
    %1989 = vmatprep.subr.mxu0 0.0
    %1990 = vmatpush2.msra.mxu0 0.0
    %1991 = vmatprep.subr.mxu0 0.0
    %1992 = vmatpush2.msra.mxu0 0.0
    %1993 = vmatprep.subr.mxu0 0.0
    %1994 = vmatpush2.msra.mxu0 0.0
    %1995 = vmatprep.subr.mxu0 0.0
    %1996 = vmatpush2.msra.mxu0 0.0
    %1997 = vmatprep.subr.mxu0 0.0
    %1998 = vmatpush2.msra.mxu0 0.0
    %1999 = vmatprep.subr.mxu0 0.0
    %2000 = vmatpush2.msra.mxu0 0.0
    %2001 = vmatprep.subr.mxu0 0.0
    %2002 = vmatpush2.msra.mxu0 0.0
    %2003 = vmatprep.subr.mxu0 0.0
    %2004 = vmatpush2.msra.mxu0 0.0
    %2005 = vmatprep.mubr.f32.mxu0 0.0
    %v2006 = vand.u32 %v1785, 4294901760
    %v2007 = vsub.f32 %v1785, %v2006
    %2008 = vmatmul.mubr.f32.gmra.mxu0 %v2007
    %v2009 = vpop.f32.mrf.mxu0
    %v2010 = vadd.f32 %v1936, %v2009
    %v2011 = vpop.f32.mrf.mxu0
    %2012 = vdwg.mxu0
    %2013 = vmatprep.subr.mxu0 0.0
    %2014 = vmatpush1.msra.mxu0 0.0
    %2015 = vmatprep.subr.mxu0 0.0
    %2016 = vmatpush1.msra.mxu0 0.0
    %2017 = vmatprep.subr.mxu0 0.0
    %2018 = vmatpush1.msra.mxu0 0.0
    %2019 = vmatprep.subr.mxu0 0.0
    %2020 = vmatpush1.msra.mxu0 0.0
    %2021 = vmatprep.subr.mxu0 0.0
    %2022 = vmatpush1.msra.mxu0 0.0
    %2023 = vmatprep.subr.mxu0 0.0
    %2024 = vmatpush1.msra.mxu0 0.0
    %2025 = vmatprep.subr.mxu0 0.0
    %2026 = vmatpush1.msra.mxu0 0.0
    %2027 = vmatprep.subr.mxu0 0.0
    %2028 = vmatpush1.msra.mxu0 0.0
    %2029 = vmatprep.subr.mxu0 0.0
    %2030 = vmatpush1.msra.mxu0 0.0
    %2031 = vmatprep.subr.mxu0 0.0
    %2032 = vmatpush1.msra.mxu0 0.0
    %2033 = vmatprep.subr.mxu0 0.0
    %2034 = vmatpush1.msra.mxu0 0.0
    %2035 = vmatprep.subr.mxu0 0.0
    %2036 = vmatpush1.msra.mxu0 0.0
    %2037 = vmatprep.subr.mxu0 0.0
    %2038 = vmatpush1.msra.mxu0 0.0
    %2039 = vmatprep.subr.mxu0 0.0
    %2040 = vmatpush1.msra.mxu0 0.0
    %2041 = vmatprep.subr.mxu0 0.0
    %2042 = vmatpush1.msra.mxu0 0.0
    %2043 = vmatprep.subr.mxu0 0.0
    %v2044 = vand.u32 %v1336, 4294901760
    %2045 = vmatpush1.msra.mxu0 %v2044
    %2046 = vmatprep.subr.mxu0 0.0
    %2047 = vmatpush2.msra.mxu0 0.0
    %2048 = vmatprep.subr.mxu0 0.0
    %2049 = vmatpush2.msra.mxu0 0.0
    %2050 = vmatprep.subr.mxu0 0.0
    %2051 = vmatpush2.msra.mxu0 0.0
    %2052 = vmatprep.subr.mxu0 0.0
    %2053 = vmatpush2.msra.mxu0 0.0
    %2054 = vmatprep.subr.mxu0 0.0
    %2055 = vmatpush2.msra.mxu0 0.0
    %2056 = vmatprep.subr.mxu0 0.0
    %2057 = vmatpush2.msra.mxu0 0.0
    %2058 = vmatprep.subr.mxu0 0.0
    %2059 = vmatpush2.msra.mxu0 0.0
    %2060 = vmatprep.subr.mxu0 0.0
    %2061 = vmatpush2.msra.mxu0 0.0
    %2062 = vmatprep.subr.mxu0 0.0
    %2063 = vmatpush2.msra.mxu0 0.0
    %2064 = vmatprep.subr.mxu0 0.0
    %2065 = vmatpush2.msra.mxu0 0.0
    %2066 = vmatprep.subr.mxu0 0.0
    %2067 = vmatpush2.msra.mxu0 0.0
    %2068 = vmatprep.subr.mxu0 0.0
    %2069 = vmatpush2.msra.mxu0 0.0
    %2070 = vmatprep.subr.mxu0 0.0
    %2071 = vmatpush2.msra.mxu0 0.0
    %2072 = vmatprep.subr.mxu0 0.0
    %2073 = vmatpush2.msra.mxu0 0.0
    %2074 = vmatprep.subr.mxu0 0.0
    %2075 = vmatpush2.msra.mxu0 0.0
    %2076 = vmatprep.subr.mxu0 0.0
    %2077 = vmatpush2.msra.mxu0 0.0
    %2078 = vmatprep.mubr.f32.mxu0 0.0
    %v2079 = vand.u32 %v1785, 4294901760
    %v2080 = vsub.f32 %v1785, %v2079
    %v2081 = vand.u32 %v2080, 4294901760
    %2082 = vmatmul.mubr.f32.gmra.mxu0 %v2081
    %v2083 = vpop.f32.mrf.mxu0
    %v2084 = vadd.f32 %v2010, %v2083
    %v2085 = vpop.f32.mrf.mxu0
    %2086 = vdwg.mxu0
    %2087 = vmatprep.subr.mxu0 0.0
    %2088 = vmatpush1.msra.mxu0 0.0
    %2089 = vmatprep.subr.mxu0 0.0
    %2090 = vmatpush1.msra.mxu0 0.0
    %2091 = vmatprep.subr.mxu0 0.0
    %2092 = vmatpush1.msra.mxu0 0.0
    %2093 = vmatprep.subr.mxu0 0.0
    %2094 = vmatpush1.msra.mxu0 0.0
    %2095 = vmatprep.subr.mxu0 0.0
    %2096 = vmatpush1.msra.mxu0 0.0
    %2097 = vmatprep.subr.mxu0 0.0
    %2098 = vmatpush1.msra.mxu0 0.0
    %2099 = vmatprep.subr.mxu0 0.0
    %2100 = vmatpush1.msra.mxu0 0.0
    %2101 = vmatprep.subr.mxu0 0.0
    %2102 = vmatpush1.msra.mxu0 0.0
    %2103 = vmatprep.subr.mxu0 0.0
    %2104 = vmatpush1.msra.mxu0 0.0
    %2105 = vmatprep.subr.mxu0 0.0
    %2106 = vmatpush1.msra.mxu0 0.0
    %2107 = vmatprep.subr.mxu0 0.0
    %2108 = vmatpush1.msra.mxu0 0.0
    %2109 = vmatprep.subr.mxu0 0.0
    %2110 = vmatpush1.msra.mxu0 0.0
    %2111 = vmatprep.subr.mxu0 0.0
    %2112 = vmatpush1.msra.mxu0 0.0
    %2113 = vmatprep.subr.mxu0 0.0
    %2114 = vmatpush1.msra.mxu0 0.0
    %2115 = vmatprep.subr.mxu0 0.0
    %2116 = vmatpush1.msra.mxu0 0.0
    %2117 = vmatprep.subr.mxu0 0.0
    %v2118 = vand.u32 %v1336, 4294901760
    %v2119 = vsub.f32 %v1336, %v2118
    %v2120 = vand.u32 %v2119, 4294901760
    %2121 = vmatpush1.msra.mxu0 %v2120
    %2122 = vmatprep.subr.mxu0 0.0
    %2123 = vmatpush2.msra.mxu0 0.0
    %2124 = vmatprep.subr.mxu0 0.0
    %2125 = vmatpush2.msra.mxu0 0.0
    %2126 = vmatprep.subr.mxu0 0.0
    %2127 = vmatpush2.msra.mxu0 0.0
    %2128 = vmatprep.subr.mxu0 0.0
    %2129 = vmatpush2.msra.mxu0 0.0
    %2130 = vmatprep.subr.mxu0 0.0
    %2131 = vmatpush2.msra.mxu0 0.0
    %2132 = vmatprep.subr.mxu0 0.0
    %2133 = vmatpush2.msra.mxu0 0.0
    %2134 = vmatprep.subr.mxu0 0.0
    %2135 = vmatpush2.msra.mxu0 0.0
    %2136 = vmatprep.subr.mxu0 0.0
    %2137 = vmatpush2.msra.mxu0 0.0
    %2138 = vmatprep.subr.mxu0 0.0
    %2139 = vmatpush2.msra.mxu0 0.0
    %2140 = vmatprep.subr.mxu0 0.0
    %2141 = vmatpush2.msra.mxu0 0.0
    %2142 = vmatprep.subr.mxu0 0.0
    %2143 = vmatpush2.msra.mxu0 0.0
    %2144 = vmatprep.subr.mxu0 0.0
    %2145 = vmatpush2.msra.mxu0 0.0
    %2146 = vmatprep.subr.mxu0 0.0
    %2147 = vmatpush2.msra.mxu0 0.0
    %2148 = vmatprep.subr.mxu0 0.0
    %2149 = vmatpush2.msra.mxu0 0.0
    %2150 = vmatprep.subr.mxu0 0.0
    %2151 = vmatpush2.msra.mxu0 0.0
    %2152 = vmatprep.subr.mxu0 0.0
    %2153 = vmatpush2.msra.mxu0 0.0
    %2154 = vmatprep.mubr.f32.mxu0 0.0
    %v2155 = vand.u32 %v1785, 4294901760
    %2156 = vmatmul.mubr.f32.gmra.mxu0 %v2155
    %v2157 = vpop.f32.mrf.mxu0
    %v2158 = vadd.f32 %v2084, %v2157
    %v2159 = vpop.f32.mrf.mxu0
    %2160 = vdwg.mxu0
    %2161 = vmatprep.subr.mxu0 0.0
    %2162 = vmatpush1.msra.mxu0 0.0
    %2163 = vmatprep.subr.mxu0 0.0
    %2164 = vmatpush1.msra.mxu0 0.0
    %2165 = vmatprep.subr.mxu0 0.0
    %2166 = vmatpush1.msra.mxu0 0.0
    %2167 = vmatprep.subr.mxu0 0.0
    %2168 = vmatpush1.msra.mxu0 0.0
    %2169 = vmatprep.subr.mxu0 0.0
    %2170 = vmatpush1.msra.mxu0 0.0
    %2171 = vmatprep.subr.mxu0 0.0
    %2172 = vmatpush1.msra.mxu0 0.0
    %2173 = vmatprep.subr.mxu0 0.0
    %2174 = vmatpush1.msra.mxu0 0.0
    %2175 = vmatprep.subr.mxu0 0.0
    %2176 = vmatpush1.msra.mxu0 0.0
    %2177 = vmatprep.subr.mxu0 0.0
    %2178 = vmatpush1.msra.mxu0 0.0
    %2179 = vmatprep.subr.mxu0 0.0
    %2180 = vmatpush1.msra.mxu0 0.0
    %2181 = vmatprep.subr.mxu0 0.0
    %2182 = vmatpush1.msra.mxu0 0.0
    %2183 = vmatprep.subr.mxu0 0.0
    %2184 = vmatpush1.msra.mxu0 0.0
    %2185 = vmatprep.subr.mxu0 0.0
    %2186 = vmatpush1.msra.mxu0 0.0
    %2187 = vmatprep.subr.mxu0 0.0
    %2188 = vmatpush1.msra.mxu0 0.0
    %2189 = vmatprep.subr.mxu0 0.0
    %2190 = vmatpush1.msra.mxu0 0.0
    %2191 = vmatprep.subr.mxu0 0.0
    %v2192 = vand.u32 %v1336, 4294901760
    %2193 = vmatpush1.msra.mxu0 %v2192
    %2194 = vmatprep.subr.mxu0 0.0
    %2195 = vmatpush2.msra.mxu0 0.0
    %2196 = vmatprep.subr.mxu0 0.0
    %2197 = vmatpush2.msra.mxu0 0.0
    %2198 = vmatprep.subr.mxu0 0.0
    %2199 = vmatpush2.msra.mxu0 0.0
    %2200 = vmatprep.subr.mxu0 0.0
    %2201 = vmatpush2.msra.mxu0 0.0
    %2202 = vmatprep.subr.mxu0 0.0
    %2203 = vmatpush2.msra.mxu0 0.0
    %2204 = vmatprep.subr.mxu0 0.0
    %2205 = vmatpush2.msra.mxu0 0.0
    %2206 = vmatprep.subr.mxu0 0.0
    %2207 = vmatpush2.msra.mxu0 0.0
    %2208 = vmatprep.subr.mxu0 0.0
    %2209 = vmatpush2.msra.mxu0 0.0
    %2210 = vmatprep.subr.mxu0 0.0
    %2211 = vmatpush2.msra.mxu0 0.0
    %2212 = vmatprep.subr.mxu0 0.0
    %2213 = vmatpush2.msra.mxu0 0.0
    %2214 = vmatprep.subr.mxu0 0.0
    %2215 = vmatpush2.msra.mxu0 0.0
    %2216 = vmatprep.subr.mxu0 0.0
    %2217 = vmatpush2.msra.mxu0 0.0
    %2218 = vmatprep.subr.mxu0 0.0
    %2219 = vmatpush2.msra.mxu0 0.0
    %2220 = vmatprep.subr.mxu0 0.0
    %2221 = vmatpush2.msra.mxu0 0.0
    %2222 = vmatprep.subr.mxu0 0.0
    %2223 = vmatpush2.msra.mxu0 0.0
    %2224 = vmatprep.subr.mxu0 0.0
    %2225 = vmatpush2.msra.mxu0 0.0
    %2226 = vmatprep.mubr.f32.mxu0 0.0
    %v2227 = vand.u32 %v1785, 4294901760
    %2228 = vmatmul.mubr.f32.gmra.mxu0 %v2227
    %v2229 = vpop.f32.mrf.mxu0
    %v2230 = vadd.f32 %v2158, %v2229
    %v2231 = vpop.f32.mrf.mxu0
    %2232 = vdwg.mxu0
    %v2233 = vsub.f32 %v15, %v1781
    %v2234 = vmul.f32 %v2233, %v2230
    %2235 = vst [vmem:[#allocation2] sm:$0xf] %v2234
    // Predicated region
    $region14: #{tpu_custom_call.1} parent=1 // pred_check
      _
    $region15: #{tpu_custom_call.1} parent=1 // pred_check_branch
      %2237 = sbr.rel (0) target = $region17
    $region16: #{tpu_custom_call.1} parent=1 // pred_region
      %s2239 = ssub.s32 64, 64
      %2240 = vsyncadd [#allocation3], %s2239
      %s2242 = sshll.u32 [#allocation2], 4
      %s2243 = int_to_ptr.vmem [resolvable:$true] %s2242
      %2245 = dma.vmem_to_hbm [thread:$0]  %s2243, 64, %s3, [#allocation3]
    $region17: #{tpu_custom_call.1} parent=1 // pred_fallthru
      _
    // Predicated region
    $region18: #{tpu_custom_call.1} parent=1 // pred_check
      _
    $region19: #{tpu_custom_call.1} parent=1 // pred_check_branch
      %2247 = sbr.rel (0) target = $region21
    $region20: #{tpu_custom_call.1} parent=1 // pred_region
      %2248 = dma.done [#allocation3], 64
    $region21: #{tpu_custom_call.1} parent=1 // pred_fallthru
      _
    %2249 = vsyncpa [#allocation3], 1

</llo_original>
